<compile_context>
chip_gen: v7x
topology: tpu7x:2x2x1
jax: 0.10.0
libtpu: 0.0.40
codegen_flags: <defaults>
</compile_context>

<pallas_src>
import functools

import jax
import jax.numpy as jnp
from jax.experimental import pallas as pl
from jax.experimental.pallas import tpu as pltpu


def _log_softmax(z):
    m = jnp.max(z, axis=-1, keepdims=True)
    zs = z - m
    return zs - jnp.log(jnp.sum(jnp.exp(zs), axis=-1, keepdims=True))


def _softmax(z):
    m = jnp.max(z, axis=-1, keepdims=True)
    e = jnp.exp(z - m)
    return e * pl.reciprocal(jnp.sum(e, axis=-1, keepdims=True), approx=True)


def _wasserstein_kernel(
    x_ref, d_ref, w_ref, b_ref,                  # inputs: (B,tD) bf16, (B,tD) f32, (C,tD) bf16, (1,C) f32
    out_ref,                                     # output: (1,1) f32
    logits_x, logits_r, logp_pred, pred, g_l,    # (B,C) f32 scratch
    r_ref, grad_ref,                             # (J,B,tD) f32 scratch
    ssq_d, ssq_g, ssq_r,                         # (B,1),(B,1),(1,1) f32 norm accumulators
    *, xi, eps, batch):
    p = pl.program_id(0)
    j = pl.program_id(1)
    n_phase = pl.num_programs(0)
    nj = pl.num_programs(1)

    w = w_ref[...]                                    # (C, tD) bf16, D on lanes
    last_j = j == nj - 1
    is_fwd = jnp.logical_and(p >= 1, (p % 2) == 1)    # phases that (re)build logits_r = r @ W^T
    is_bwd = jnp.logical_and(p >= 2, (p % 2) == 0)    # phases that build grad tiles

    contract_d = (((1,), (1,)), ((), ()))             # (B,tD) x (C,tD) -> (B,C), contract on D

    # ---------- phase 0: clean logits_x = x @ W^T + b, ||d||^2, pred ----------
    @pl.when(jnp.logical_and(p == 0, j == 0))
    def _():
        logits_x[...] = jnp.zeros_like(logits_x)
        ssq_d[...] = jnp.zeros_like(ssq_d)
        out_ref[...] = jnp.zeros_like(out_ref)

    @pl.when(p == 0)
    def _():
        logits_x[...] += jax.lax.dot_general(
            x_ref[...], w, contract_d, preferred_element_type=jnp.float32)
        dt = d_ref[...]
        ssq_d[...] += jnp.sum(dt * dt, axis=-1, keepdims=True)

    @pl.when(jnp.logical_and(p == 0, last_j))
    def _():
        lx = logits_x[...] + b_ref[...]
        logits_x[...] = lx
        lp = _log_softmax(lx)                         # numerically safe log-probs of pred
        logp_pred[...] = lp
        pred[...] = jnp.exp(lp)

    # ---------- forward phases (p odd): update r, accumulate logits_r ----------
    @pl.when(jnp.logical_and(is_fwd, j == 0))
    def _():
        logits_r[...] = jnp.zeros_like(logits_r)
        ssq_r[...] = jnp.zeros_like(ssq_r)

    @pl.when(p == 1)
    def _():   # r = eps * _l2_normalize(d)   (per-sample norm)
        inv_n = pl.reciprocal(jnp.sqrt(ssq_d[...]) + 1e-8, approx=True)
        r_ref[j] = (eps * d_ref[...]) * inv_n

    @pl.when(jnp.logical_and(is_fwd, p > 1))
    def _():   # r += eps * _l2_normalize(grad)   (per-sample norm)
        inv_n = pl.reciprocal(jnp.sqrt(ssq_g[...]) + 1e-8, approx=True)
        r_ref[j] = r_ref[j] + (eps * grad_ref[j]) * inv_n

    @pl.when(is_fwd)
    def _():
        r_t = r_ref[j]
        logits_r[...] += jax.lax.dot_general(
            r_t.astype(jnp.bfloat16), w, contract_d,
            preferred_element_type=jnp.float32)
        ssq_r[...] += jnp.sum(r_t * r_t, keepdims=True)   # global (Frobenius) norm of x_adv - x

    @pl.when(jnp.logical_and(jnp.logical_and(is_fwd, last_j), p < n_phase - 1))
    def _():   # d(xi * KL_batchmean)/d(logits_adv), consumed by the next backward pass
        p_adv = _softmax(logits_x[...] + logits_r[...])
        g_l[...] = (xi / batch) * (p_adv - pred[...])

    @pl.when(jnp.logical_and(jnp.logical_and(is_fwd, last_j), p == n_phase - 1))
    def _():   # lds = KL(pred || softmax(model(x_adv))), batch-mean
        lq = _log_softmax(logits_x[...] + logits_r[...])
        kl = jnp.sum(pred[...] * (logp_pred[...] - lq), keepdims=True)
        out_ref[...] = kl * (1.0 / batch)

    # ---------- backward phases (p even >= 2): grad = g_l @ W - r/||r||_F ----------
    @pl.when(jnp.logical_and(is_bwd, j == 0))
    def _():
        ssq_g[...] = jnp.zeros_like(ssq_g)

    @pl.when(is_bwd)
    def _():
        inv_frob = pl.reciprocal(jnp.sqrt(ssq_r[...]) + 1e-12, approx=True)   # eps-guarded
        g_kl = jnp.dot(g_l[...].astype(jnp.bfloat16), w,
                       preferred_element_type=jnp.float32)                    # (B, tD)
        g_t = g_kl - r_ref[j] * inv_frob
        grad_ref[j] = g_t
        ssq_g[...] += jnp.sum(g_t * g_t, axis=-1, keepdims=True)


def _pick_tile_d(D, target=512):
    """Largest multiple-of-128 divisor of D that is <= target (else the full D)."""
    if D <= target:
        return D
    t = (target // 128) * 128
    while t >= 128:
        if D % t == 0:
            return t
        t -= 128
    return D


def wasserstein_loss(x, d, w_cd, b, *, xi=0.3, eps=1.0, ip=1, tile_d=512):
    """x, d: [B, C, H, W]; w_cd: [num_classes, D] (D on lanes, logits = x_flat @ w_cd.T + b);
    b: [num_classes]. Returns scalar f32 VAT loss (lds)."""
    B = x.shape[0]
    x_flat = x.reshape(B, -1).astype(jnp.bfloat16)    # only used in the single x @ W^T pass
    d_flat = d.reshape(B, -1).astype(jnp.float32)     # norms/updates stay f32
    D = x_flat.shape[1]
    C = w_cd.shape[0]
    assert w_cd.shape == (C, D) and b.shape[-1] == C

    w_bf = w_cd.astype(jnp.bfloat16)                  # single D-on-lanes weight copy (bf16)
    b2 = b.reshape(1, C).astype(jnp.float32)

    tD = _pick_tile_d(D, tile_d)
    J = D // tD
    P = 2 * int(ip) + 2                               # clean fwd + ip*(fwd, bwd) + final fwd

    # --- explicit VMEM budget (leaves headroom for v7x's 64 MiB physical VMEM) ---
    pad = lambda n, m: -(-n // m) * m
    Bp, Cp, tDp = pad(B, 8), pad(C, 16), pad(tD, 128)
    stream = 2 * (Cp * tDp * 2 + 2 * Bp * tDp * 4)              # double-buffered W + x + d tiles
    persist = 2 * J * Bp * tDp * 4 + 8 * Bp * pad(C, 128) * 4   # r/grad + small (B,C) scratch
    vmem_limit = int(min(max(4 * (stream + persist), 16 << 20), 48 << 20))

    cost = pl.CostEstimate(
        flops=int(2 * B * C * D * P + 12 * B * D * P),
        transcendentals=int(2 * B * C * (ip + 2)),
        bytes_accessed=int(2 * C * D * P + 6 * B * D),
    )

    kernel = functools.partial(
        _wasserstein_kernel, xi=float(xi), eps=float(eps), batch=float(B))

    grid_spec = pltpu.PrefetchScalarGridSpec(
        num_scalar_prefetch=0,
        grid=(P, J),
        in_specs=[
            pl.BlockSpec((B, tD), lambda p, j: (0, j)),   # x   (bf16)
            pl.BlockSpec((B, tD), lambda p, j: (0, j)),   # d   (f32)
            pl.BlockSpec((C, tD), lambda p, j: (0, j)),   # W   (bf16, D on lanes)
            pl.BlockSpec((1, C), lambda p, j: (0, 0)),    # bias
        ],
        out_specs=pl.BlockSpec((1, 1), lambda p, j: (0, 0)),
        scratch_shapes=[
            pltpu.VMEM((B, C), jnp.float32),      # logits_x (clean logits, computed once)
            pltpu.VMEM((B, C), jnp.float32),      # logits_r (r @ W^T accumulator)
            pltpu.VMEM((B, C), jnp.float32),      # logp_pred
            pltpu.VMEM((B, C), jnp.float32),      # pred
            pltpu.VMEM((B, C), jnp.float32),      # g_l = xi/B * (p_adv - pred)
            pltpu.VMEM((J, B, tD), jnp.float32),  # r = x_adv - x
            pltpu.VMEM((J, B, tD), jnp.float32),  # grad
            pltpu.VMEM((B, 1), jnp.float32),      # sum d^2    (per sample)
            pltpu.VMEM((B, 1), jnp.float32),      # sum grad^2 (per sample)
            pltpu.VMEM((1, 1), jnp.float32),      # sum r^2    (global, Frobenius)
        ],
    )

    out = pl.pallas_call(
        kernel,
        out_shape=jax.ShapeDtypeStruct((1, 1), jnp.float32),
        grid_spec=grid_spec,
        compiler_params=pltpu.CompilerParams(
            dimension_semantics=("arbitrary", "arbitrary"),
            vmem_limit_bytes=vmem_limit,
        ),
        cost_estimate=cost,
    )(x_flat, d_flat, w_bf, b2)
    return out[0, 0]


if __name__ == "__main__":
    key = jax.random.PRNGKey(0)
    k_x, k_d, k_w = jax.random.split(key, 3)

    B, C, H, Wd = 2, 4, 16, 16
    NUM_CLASSES = 16
    D = C * H * Wd

    x = jax.random.normal(k_x, (B, C, H, Wd), dtype=jnp.float32)
    # torch.rand(x.shape).sub(0.5) -> uniform in [-0.5, 0.5)
    d = jax.random.uniform(k_d, (B, C, H, Wd), dtype=jnp.float32) - 0.5

    # Deterministic synthetic "model": logits = x_flat @ w_cd.T + bias,
    # weights kept directly in the D-on-lanes (num_classes, D) layout.
    w_cd = 0.02 * jax.random.normal(k_w, (NUM_CLASSES, D), dtype=jnp.float32)
    bias = jnp.zeros((NUM_CLASSES,), dtype=jnp.float32)

    lds = wasserstein_loss(x, d, w_cd, bias, xi=0.3, eps=1.0, ip=1)
    jax.block_until_ready(lds)
    assert lds.shape == () and bool(jnp.isfinite(lds))
    print("KERNEL_OK")
</pallas_src>

<mosaic_0001>
module attributes {stable_mosaic.version = 11 : i64} {
  func.func @_wasserstein_kernel(%arg0: i32, %arg1: i32, %arg2: memref<2x512xbf16, #tpu.memory_space<vmem>>, %arg3: memref<2x512xf32, #tpu.memory_space<vmem>>, %arg4: memref<16x512xbf16, #tpu.memory_space<vmem>>, %arg5: memref<1x16xf32, #tpu.memory_space<vmem>>, %arg6: memref<1x1xf32, #tpu.memory_space<vmem>>, %arg7: memref<2x16xf32, #tpu.memory_space<vmem>>, %arg8: memref<2x16xf32, #tpu.memory_space<vmem>>, %arg9: memref<2x16xf32, #tpu.memory_space<vmem>>, %arg10: memref<2x16xf32, #tpu.memory_space<vmem>>, %arg11: memref<2x16xf32, #tpu.memory_space<vmem>>, %arg12: memref<2x2x512xf32, #tpu.memory_space<vmem>>, %arg13: memref<2x2x512xf32, #tpu.memory_space<vmem>>, %arg14: memref<2x1xf32, #tpu.memory_space<vmem>>, %arg15: memref<2x1xf32, #tpu.memory_space<vmem>>, %arg16: memref<1x1xf32, #tpu.memory_space<vmem>>) attributes {dimension_semantics = [#tpu.dimension_semantics<arbitrary>, #tpu.dimension_semantics<arbitrary>], iteration_bounds = array<i64: 4, 2>, scalar_prefetch = 0 : i64, scratch_operands = 10 : i64, tpu.core_type = #tpu.core_type<tc>, window_params = [{transform_indices = @transform_0, window_bounds = array<i64: 2, 512>}, {transform_indices = @transform_1, window_bounds = array<i64: 2, 512>}, {transform_indices = @transform_2, window_bounds = array<i64: 16, 512>}, {pipeline_mode = #tpu.pipeline_mode<synchronous>, transform_indices = @transform_3, window_bounds = array<i64: 1, 16>}, {pipeline_mode = #tpu.pipeline_mode<synchronous>, transform_indices = @transform_4, window_bounds = array<i64: 1, 1>}]} {
    %c0 = arith.constant 0 : index
    %c0_0 = arith.constant 0 : index
    %0 = vector.load %arg4[%c0, %c0_0] : memref<16x512xbf16, #tpu.memory_space<vmem>>, vector<16x512xbf16>
    %c1_i32 = arith.constant 1 : i32
    %1 = arith.cmpi eq, %arg1, %c1_i32 : i32
    %c1_i32_1 = arith.constant 1 : i32
    %2 = arith.cmpi sge, %arg0, %c1_i32_1 : i32
    %c2_i32 = arith.constant 2 : i32
    %c0_i32 = arith.constant 0 : i32
    %3 = arith.cmpi eq, %c2_i32, %c0_i32 : i32
    %c1_i32_2 = arith.constant 1 : i32
    %4 = arith.select %3, %c1_i32_2, %c2_i32 : i32
    %5 = arith.remsi %arg0, %4 : i32
    %c0_i32_3 = arith.constant 0 : i32
    %6 = arith.cmpi ne, %5, %c0_i32_3 : i32
    %c0_i32_4 = arith.constant 0 : i32
    %7 = arith.cmpi slt, %5, %c0_i32_4 : i32
    %c0_i32_5 = arith.constant 0 : i32
    %8 = arith.cmpi slt, %4, %c0_i32_5 : i32
    %9 = arith.xori %7, %8 : i1
    %10 = arith.andi %9, %6 : i1
    %11 = arith.addi %5, %4 : i32
    %12 = arith.select %10, %11, %5 : i32
    %c1_i32_6 = arith.constant 1 : i32
    %13 = arith.cmpi eq, %12, %c1_i32_6 : i32
    %14 = arith.andi %2, %13 : i1
    %c2_i32_7 = arith.constant 2 : i32
    %15 = arith.cmpi sge, %arg0, %c2_i32_7 : i32
    %c2_i32_8 = arith.constant 2 : i32
    %c0_i32_9 = arith.constant 0 : i32
    %16 = arith.cmpi eq, %c2_i32_8, %c0_i32_9 : i32
    %c1_i32_10 = arith.constant 1 : i32
    %17 = arith.select %16, %c1_i32_10, %c2_i32_8 : i32
    %18 = arith.remsi %arg0, %17 : i32
    %c0_i32_11 = arith.constant 0 : i32
    %19 = arith.cmpi ne, %18, %c0_i32_11 : i32
    %c0_i32_12 = arith.constant 0 : i32
    %20 = arith.cmpi slt, %18, %c0_i32_12 : i32
    %c0_i32_13 = arith.constant 0 : i32
    %21 = arith.cmpi slt, %17, %c0_i32_13 : i32
    %22 = arith.xori %20, %21 : i1
    %23 = arith.andi %22, %19 : i1
    %24 = arith.addi %18, %17 : i32
    %25 = arith.select %23, %24, %18 : i32
    %c0_i32_14 = arith.constant 0 : i32
    %26 = arith.cmpi eq, %25, %c0_i32_14 : i32
    %27 = arith.andi %15, %26 : i1
    %c0_i32_15 = arith.constant 0 : i32
    %28 = arith.cmpi eq, %arg0, %c0_i32_15 : i32
    %c0_i32_16 = arith.constant 0 : i32
    %29 = arith.cmpi eq, %arg1, %c0_i32_16 : i32
    %30 = arith.andi %28, %29 : i1
    %31 = arith.extui %30 : i1 to i32
    %c0_i32_17 = arith.constant 0 : i32
    %32 = arith.cmpi ne, %31, %c0_i32_17 : i32
    scf.if %32 {
      %cst = arith.constant 0.000000e+00 : f32
      %69 = vector.broadcast %cst : f32 to vector<2x16xf32>
      %c0_35 = arith.constant 0 : index
      %c0_36 = arith.constant 0 : index
      %70 = vector.load %arg7[%c0_35, %c0_36] : memref<2x16xf32, #tpu.memory_space<vmem>>, vector<2x16xf32>
      tpu.vector_store %arg7[%c0_35, %c0_36], %69 {strides = array<i32>} : memref<2x16xf32, #tpu.memory_space<vmem>>, vector<2x16xf32>,
      %cst_37 = arith.constant 0.000000e+00 : f32
      %71 = vector.broadcast %cst_37 : f32 to vector<2x1xf32>
      %c0_38 = arith.constant 0 : index
      %c0_39 = arith.constant 0 : index
      %72 = vector.load %arg14[%c0_38, %c0_39] : memref<2x1xf32, #tpu.memory_space<vmem>>, vector<2x1xf32>
      tpu.vector_store %arg14[%c0_38, %c0_39], %71 {strides = array<i32>} : memref<2x1xf32, #tpu.memory_space<vmem>>, vector<2x1xf32>,
      %cst_40 = arith.constant 0.000000e+00 : f32
      %73 = vector.broadcast %cst_40 : f32 to vector<1x1xf32>
      %c0_41 = arith.constant 0 : index
      %c0_42 = arith.constant 0 : index
      %74 = vector.load %arg6[%c0_41, %c0_42] : memref<1x1xf32, #tpu.memory_space<vmem>>, vector<1x1xf32>
      tpu.vector_store %arg6[%c0_41, %c0_42], %73 {strides = array<i32>} : memref<1x1xf32, #tpu.memory_space<vmem>>, vector<1x1xf32>,
    } else {
    }
    %c0_i32_18 = arith.constant 0 : i32
    %33 = arith.cmpi eq, %arg0, %c0_i32_18 : i32
    %34 = arith.extui %33 : i1 to i32
    %c0_i32_19 = arith.constant 0 : i32
    %35 = arith.cmpi ne, %34, %c0_i32_19 : i32
    scf.if %35 {
      %c0_35 = arith.constant 0 : index
      %c0_36 = arith.constant 0 : index
      %69 = vector.load %arg7[%c0_35, %c0_36] : memref<2x16xf32, #tpu.memory_space<vmem>>, vector<2x16xf32>
      %c0_37 = arith.constant 0 : index
      %c0_38 = arith.constant 0 : index
      %70 = vector.load %arg2[%c0_37, %c0_38] : memref<2x512xbf16, #tpu.memory_space<vmem>>, vector<2x512xbf16>
      %cst = arith.constant dense<0.000000e+00> : vector<2x16xf32>
      %71 = tpu.matmul %70, %0, %cst {dimension_numbers = #tpu.dot_dimension_numbers<[1], [1], [0], [0], [0, 0, 1, 0], [], []>} : vector<2x512xbf16>, vector<16x512xbf16>, vector<2x16xf32> -> vector<2x16xf32>
      %72 = arith.addf %69, %71 : vector<2x16xf32>
      %c0_39 = arith.constant 0 : index
      %c0_40 = arith.constant 0 : index
      %73 = vector.load %arg7[%c0_39, %c0_40] : memref<2x16xf32, #tpu.memory_space<vmem>>, vector<2x16xf32>
      tpu.vector_store %arg7[%c0_39, %c0_40], %72 {strides = array<i32>} : memref<2x16xf32, #tpu.memory_space<vmem>>, vector<2x16xf32>,
      %c0_41 = arith.constant 0 : index
      %c0_42 = arith.constant 0 : index
      %74 = vector.load %arg3[%c0_41, %c0_42] : memref<2x512xf32, #tpu.memory_space<vmem>>, vector<2x512xf32>
      %c0_43 = arith.constant 0 : index
      %c0_44 = arith.constant 0 : index
      %75 = vector.load %arg14[%c0_43, %c0_44] : memref<2x1xf32, #tpu.memory_space<vmem>>, vector<2x1xf32>
      %76 = arith.mulf %74, %74 : vector<2x512xf32>
      %cst_45 = arith.constant dense<0.000000e+00> : vector<2xf32>
      %77 = vector.multi_reduction <add>, %76, %cst_45 [1] : vector<2x512xf32> to vector<2xf32>
      %78 = vector.shape_cast %77 : vector<2xf32> to vector<2x1xf32>
      %79 = arith.addf %75, %78 : vector<2x1xf32>
      %c0_46 = arith.constant 0 : index
      %c0_47 = arith.constant 0 : index
      %80 = vector.load %arg14[%c0_46, %c0_47] : memref<2x1xf32, #tpu.memory_space<vmem>>, vector<2x1xf32>
      tpu.vector_store %arg14[%c0_46, %c0_47], %79 {strides = array<i32>} : memref<2x1xf32, #tpu.memory_space<vmem>>, vector<2x1xf32>,
    } else {
    }
    %c0_i32_20 = arith.constant 0 : i32
    %36 = arith.cmpi eq, %arg0, %c0_i32_20 : i32
    %37 = arith.andi %36, %1 : i1
    %38 = arith.extui %37 : i1 to i32
    %c0_i32_21 = arith.constant 0 : i32
    %39 = arith.cmpi ne, %38, %c0_i32_21 : i32
    scf.if %39 {
      %c0_35 = arith.constant 0 : index
      %c0_36 = arith.constant 0 : index
      %69 = vector.load %arg7[%c0_35, %c0_36] : memref<2x16xf32, #tpu.memory_space<vmem>>, vector<2x16xf32>
      %c0_37 = arith.constant 0 : index
      %c0_38 = arith.constant 0 : index
      %70 = vector.load %arg5[%c0_37, %c0_38] : memref<1x16xf32, #tpu.memory_space<vmem>>, vector<1x16xf32>
      %71 = vector.broadcast %70 : vector<1x16xf32> to vector<2x16xf32>
      %72 = arith.addf %69, %71 : vector<2x16xf32>
      %c0_39 = arith.constant 0 : index
      %c0_40 = arith.constant 0 : index
      %73 = vector.load %arg7[%c0_39, %c0_40] : memref<2x16xf32, #tpu.memory_space<vmem>>, vector<2x16xf32>
      tpu.vector_store %arg7[%c0_39, %c0_40], %72 {strides = array<i32>} : memref<2x16xf32, #tpu.memory_space<vmem>>, vector<2x16xf32>,
      %cst = arith.constant dense<0xFF800000> : vector<2xf32>
      %74 = vector.multi_reduction <maximumf>, %72, %cst [1] : vector<2x16xf32> to vector<2xf32>
      %75 = vector.shape_cast %74 : vector<2xf32> to vector<2x1xf32>
      %76 = vector.broadcast %75 : vector<2x1xf32> to vector<2x16xf32>
      %77 = arith.subf %72, %76 : vector<2x16xf32>
      %78 = math.exp %77 : vector<2x16xf32>
      %cst_41 = arith.constant dense<0.000000e+00> : vector<2xf32>
      %79 = vector.multi_reduction <add>, %78, %cst_41 [1] : vector<2x16xf32> to vector<2xf32>
      %80 = vector.shape_cast %79 : vector<2xf32> to vector<2x1xf32>
      %81 = math.log %80 : vector<2x1xf32>
      %82 = vector.broadcast %81 : vector<2x1xf32> to vector<2x16xf32>
      %83 = arith.subf %77, %82 : vector<2x16xf32>
      %c0_42 = arith.constant 0 : index
      %c0_43 = arith.constant 0 : index
      %84 = vector.load %arg9[%c0_42, %c0_43] : memref<2x16xf32, #tpu.memory_space<vmem>>, vector<2x16xf32>
      tpu.vector_store %arg9[%c0_42, %c0_43], %83 {strides = array<i32>} : memref<2x16xf32, #tpu.memory_space<vmem>>, vector<2x16xf32>,
      %85 = math.exp %83 : vector<2x16xf32>
      %c0_44 = arith.constant 0 : index
      %c0_45 = arith.constant 0 : index
      %86 = vector.load %arg10[%c0_44, %c0_45] : memref<2x16xf32, #tpu.memory_space<vmem>>, vector<2x16xf32>
      tpu.vector_store %arg10[%c0_44, %c0_45], %85 {strides = array<i32>} : memref<2x16xf32, #tpu.memory_space<vmem>>, vector<2x16xf32>,
    } else {
    }
    %c0_i32_22 = arith.constant 0 : i32
    %40 = arith.cmpi eq, %arg1, %c0_i32_22 : i32
    %41 = arith.andi %14, %40 : i1
    %42 = arith.extui %41 : i1 to i32
    %c0_i32_23 = arith.constant 0 : i32
    %43 = arith.cmpi ne, %42, %c0_i32_23 : i32
    scf.if %43 {
      %cst = arith.constant 0.000000e+00 : f32
      %69 = vector.broadcast %cst : f32 to vector<2x16xf32>
      %c0_35 = arith.constant 0 : index
      %c0_36 = arith.constant 0 : index
      %70 = vector.load %arg8[%c0_35, %c0_36] : memref<2x16xf32, #tpu.memory_space<vmem>>, vector<2x16xf32>
      tpu.vector_store %arg8[%c0_35, %c0_36], %69 {strides = array<i32>} : memref<2x16xf32, #tpu.memory_space<vmem>>, vector<2x16xf32>,
      %cst_37 = arith.constant 0.000000e+00 : f32
      %71 = vector.broadcast %cst_37 : f32 to vector<1x1xf32>
      %c0_38 = arith.constant 0 : index
      %c0_39 = arith.constant 0 : index
      %72 = vector.load %arg16[%c0_38, %c0_39] : memref<1x1xf32, #tpu.memory_space<vmem>>, vector<1x1xf32>
      tpu.vector_store %arg16[%c0_38, %c0_39], %71 {strides = array<i32>} : memref<1x1xf32, #tpu.memory_space<vmem>>, vector<1x1xf32>,
    } else {
    }
    %c1_i32_24 = arith.constant 1 : i32
    %44 = arith.cmpi eq, %arg0, %c1_i32_24 : i32
    %45 = arith.extui %44 : i1 to i32
    %c0_i32_25 = arith.constant 0 : i32
    %46 = arith.cmpi ne, %45, %c0_i32_25 : i32
    scf.if %46 {
      %c0_35 = arith.constant 0 : index
      %c0_36 = arith.constant 0 : index
      %69 = vector.load %arg14[%c0_35, %c0_36] : memref<2x1xf32, #tpu.memory_space<vmem>>, vector<2x1xf32>
      %70 = math.sqrt %69 : vector<2x1xf32>
      %cst = arith.constant 9.99999993E-9 : f32
      %71 = vector.broadcast %cst : f32 to vector<2x1xf32>
      %72 = arith.addf %70, %71 : vector<2x1xf32>
      %73 = tpu.reciprocal %72 {approx = true} : vector<2x1xf32> -> vector<2x1xf32>
      %c0_37 = arith.constant 0 : index
      %c0_38 = arith.constant 0 : index
      %74 = vector.load %arg3[%c0_37, %c0_38] : memref<2x512xf32, #tpu.memory_space<vmem>>, vector<2x512xf32>
      %cst_39 = arith.constant 1.000000e+00 : f32
      %75 = vector.broadcast %cst_39 : f32 to vector<2x512xf32>
      %76 = arith.mulf %75, %74 : vector<2x512xf32>
      %77 = vector.broadcast %73 : vector<2x1xf32> to vector<2x512xf32>
      %78 = arith.mulf %76, %77 : vector<2x512xf32>
      %79 = arith.index_cast %arg1 : i32 to index
      %c0_40 = arith.constant 0 : index
      %c0_41 = arith.constant 0 : index
      %80 = vector.load %arg12[%79, %c0_40, %c0_41] : memref<2x2x512xf32, #tpu.memory_space<vmem>>, vector<1x2x512xf32>
      %81 = vector.shape_cast %80 : vector<1x2x512xf32> to vector<2x512xf32>
      %82 = vector.shape_cast %78 : vector<2x512xf32> to vector<1x2x512xf32>
      tpu.vector_store %arg12[%79, %c0_40, %c0_41], %82 {strides = array<i32>} : memref<2x2x512xf32, #tpu.memory_space<vmem>>, vector<1x2x512xf32>,
    } else {
    }
    %c1_i32_26 = arith.constant 1 : i32
    %47 = arith.cmpi sgt, %arg0, %c1_i32_26 : i32
    %48 = arith.andi %14, %47 : i1
    %49 = arith.extui %48 : i1 to i32
    %c0_i32_27 = arith.constant 0 : i32
    %50 = arith.cmpi ne, %49, %c0_i32_27 : i32
    scf.if %50 {
      %c0_35 = arith.constant 0 : index
      %c0_36 = arith.constant 0 : index
      %69 = vector.load %arg15[%c0_35, %c0_36] : memref<2x1xf32, #tpu.memory_space<vmem>>, vector<2x1xf32>
      %70 = math.sqrt %69 : vector<2x1xf32>
      %cst = arith.constant 9.99999993E-9 : f32
      %71 = vector.broadcast %cst : f32 to vector<2x1xf32>
      %72 = arith.addf %70, %71 : vector<2x1xf32>
      %73 = tpu.reciprocal %72 {approx = true} : vector<2x1xf32> -> vector<2x1xf32>
      %74 = arith.index_cast %arg1 : i32 to index
      %c0_37 = arith.constant 0 : index
      %c0_38 = arith.constant 0 : index
      %75 = vector.load %arg12[%74, %c0_37, %c0_38] : memref<2x2x512xf32, #tpu.memory_space<vmem>>, vector<1x2x512xf32>
      %76 = vector.shape_cast %75 : vector<1x2x512xf32> to vector<2x512xf32>
      %77 = arith.index_cast %arg1 : i32 to index
      %c0_39 = arith.constant 0 : index
      %c0_40 = arith.constant 0 : index
      %78 = vector.load %arg13[%77, %c0_39, %c0_40] : memref<2x2x512xf32, #tpu.memory_space<vmem>>, vector<1x2x512xf32>
      %79 = vector.shape_cast %78 : vector<1x2x512xf32> to vector<2x512xf32>
      %cst_41 = arith.constant 1.000000e+00 : f32
      %80 = vector.broadcast %cst_41 : f32 to vector<2x512xf32>
      %81 = arith.mulf %80, %79 : vector<2x512xf32>
      %82 = vector.broadcast %73 : vector<2x1xf32> to vector<2x512xf32>
      %83 = arith.mulf %81, %82 : vector<2x512xf32>
      %84 = arith.addf %76, %83 : vector<2x512xf32>
      %85 = arith.index_cast %arg1 : i32 to index
      %c0_42 = arith.constant 0 : index
      %c0_43 = arith.constant 0 : index
      %86 = vector.load %arg12[%85, %c0_42, %c0_43] : memref<2x2x512xf32, #tpu.memory_space<vmem>>, vector<1x2x512xf32>
      %87 = vector.shape_cast %86 : vector<1x2x512xf32> to vector<2x512xf32>
      %88 = vector.shape_cast %84 : vector<2x512xf32> to vector<1x2x512xf32>
      tpu.vector_store %arg12[%85, %c0_42, %c0_43], %88 {strides = array<i32>} : memref<2x2x512xf32, #tpu.memory_space<vmem>>, vector<1x2x512xf32>,
    } else {
    }
    %51 = arith.extui %14 : i1 to i32
    %c0_i32_28 = arith.constant 0 : i32
    %52 = arith.cmpi ne, %51, %c0_i32_28 : i32
    scf.if %52 {
      %69 = arith.index_cast %arg1 : i32 to index
      %c0_35 = arith.constant 0 : index
      %c0_36 = arith.constant 0 : index
      %70 = vector.load %arg12[%69, %c0_35, %c0_36] : memref<2x2x512xf32, #tpu.memory_space<vmem>>, vector<1x2x512xf32>
      %71 = vector.shape_cast %70 : vector<1x2x512xf32> to vector<2x512xf32>
      %c0_37 = arith.constant 0 : index
      %c0_38 = arith.constant 0 : index
      %72 = vector.load %arg8[%c0_37, %c0_38] : memref<2x16xf32, #tpu.memory_space<vmem>>, vector<2x16xf32>
      %73 = arith.truncf %71 : vector<2x512xf32> to vector<2x512xbf16>
      %cst = arith.constant dense<0.000000e+00> : vector<2x16xf32>
      %74 = tpu.matmul %73, %0, %cst {dimension_numbers = #tpu.dot_dimension_numbers<[1], [1], [0], [0], [0, 0, 1, 0], [], []>} : vector<2x512xbf16>, vector<16x512xbf16>, vector<2x16xf32> -> vector<2x16xf32>
      %75 = arith.addf %72, %74 : vector<2x16xf32>
      %c0_39 = arith.constant 0 : index
      %c0_40 = arith.constant 0 : index
      %76 = vector.load %arg8[%c0_39, %c0_40] : memref<2x16xf32, #tpu.memory_space<vmem>>, vector<2x16xf32>
      tpu.vector_store %arg8[%c0_39, %c0_40], %75 {strides = array<i32>} : memref<2x16xf32, #tpu.memory_space<vmem>>, vector<2x16xf32>,
      %c0_41 = arith.constant 0 : index
      %c0_42 = arith.constant 0 : index
      %77 = vector.load %arg16[%c0_41, %c0_42] : memref<1x1xf32, #tpu.memory_space<vmem>>, vector<1x1xf32>
      %78 = arith.mulf %71, %71 : vector<2x512xf32>
      %79 = vector.shape_cast %78 : vector<2x512xf32> to vector<1x2x512xf32>
      %cst_43 = arith.constant dense<0.000000e+00> : vector<1xf32>
      %80 = vector.multi_reduction <add>, %79, %cst_43 [1, 2] : vector<1x2x512xf32> to vector<1xf32>
      %81 = vector.shape_cast %80 : vector<1xf32> to vector<1x1x1xf32>
      %82 = vector.extract %81[0, 0, 0] : f32 from vector<1x1x1xf32>
      %83 = vector.broadcast %82 : f32 to vector<1x1xf32>
      %84 = arith.addf %77, %83 : vector<1x1xf32>
      %c0_44 = arith.constant 0 : index
      %c0_45 = arith.constant 0 : index
      %85 = vector.load %arg16[%c0_44, %c0_45] : memref<1x1xf32, #tpu.memory_space<vmem>>, vector<1x1xf32>
      tpu.vector_store %arg16[%c0_44, %c0_45], %84 {strides = array<i32>} : memref<1x1xf32, #tpu.memory_space<vmem>>, vector<1x1xf32>,
    } else {
    }
    %53 = arith.andi %14, %1 : i1
    %c3_i32 = arith.constant 3 : i32
    %54 = arith.cmpi slt, %arg0, %c3_i32 : i32
    %55 = arith.andi %53, %54 : i1
    %56 = arith.extui %55 : i1 to i32
    %c0_i32_29 = arith.constant 0 : i32
    %57 = arith.cmpi ne, %56, %c0_i32_29 : i32
    scf.if %57 {
      %c0_35 = arith.constant 0 : index
      %c0_36 = arith.constant 0 : index
      %69 = vector.load %arg7[%c0_35, %c0_36] : memref<2x16xf32, #tpu.memory_space<vmem>>, vector<2x16xf32>
      %c0_37 = arith.constant 0 : index
      %c0_38 = arith.constant 0 : index
      %70 = vector.load %arg8[%c0_37, %c0_38] : memref<2x16xf32, #tpu.memory_space<vmem>>, vector<2x16xf32>
      %71 = arith.addf %69, %70 : vector<2x16xf32>
      %cst = arith.constant dense<0xFF800000> : vector<2xf32>
      %72 = vector.multi_reduction <maximumf>, %71, %cst [1] : vector<2x16xf32> to vector<2xf32>
      %73 = vector.shape_cast %72 : vector<2xf32> to vector<2x1xf32>
      %74 = vector.broadcast %73 : vector<2x1xf32> to vector<2x16xf32>
      %75 = arith.subf %71, %74 : vector<2x16xf32>
      %76 = math.exp %75 : vector<2x16xf32>
      %cst_39 = arith.constant dense<0.000000e+00> : vector<2xf32>
      %77 = vector.multi_reduction <add>, %76, %cst_39 [1] : vector<2x16xf32> to vector<2xf32>
      %78 = vector.shape_cast %77 : vector<2xf32> to vector<2x1xf32>
      %79 = tpu.reciprocal %78 {approx = true} : vector<2x1xf32> -> vector<2x1xf32>
      %80 = vector.broadcast %79 : vector<2x1xf32> to vector<2x16xf32>
      %81 = arith.mulf %76, %80 : vector<2x16xf32>
      %c0_40 = arith.constant 0 : index
      %c0_41 = arith.constant 0 : index
      %82 = vector.load %arg10[%c0_40, %c0_41] : memref<2x16xf32, #tpu.memory_space<vmem>>, vector<2x16xf32>
      %83 = arith.subf %81, %82 : vector<2x16xf32>
      %cst_42 = arith.constant 1.500000e-01 : f32
      %84 = vector.broadcast %cst_42 : f32 to vector<2x16xf32>
      %85 = arith.mulf %84, %83 : vector<2x16xf32>
      %c0_43 = arith.constant 0 : index
      %c0_44 = arith.constant 0 : index
      %86 = vector.load %arg11[%c0_43, %c0_44] : memref<2x16xf32, #tpu.memory_space<vmem>>, vector<2x16xf32>
      tpu.vector_store %arg11[%c0_43, %c0_44], %85 {strides = array<i32>} : memref<2x16xf32, #tpu.memory_space<vmem>>, vector<2x16xf32>,
    } else {
    }
    %58 = arith.andi %14, %1 : i1
    %c3_i32_30 = arith.constant 3 : i32
    %59 = arith.cmpi eq, %arg0, %c3_i32_30 : i32
    %60 = arith.andi %58, %59 : i1
    %61 = arith.extui %60 : i1 to i32
    %c0_i32_31 = arith.constant 0 : i32
    %62 = arith.cmpi ne, %61, %c0_i32_31 : i32
    scf.if %62 {
      %c0_35 = arith.constant 0 : index
      %c0_36 = arith.constant 0 : index
      %69 = vector.load %arg7[%c0_35, %c0_36] : memref<2x16xf32, #tpu.memory_space<vmem>>, vector<2x16xf32>
      %c0_37 = arith.constant 0 : index
      %c0_38 = arith.constant 0 : index
      %70 = vector.load %arg8[%c0_37, %c0_38] : memref<2x16xf32, #tpu.memory_space<vmem>>, vector<2x16xf32>
      %71 = arith.addf %69, %70 : vector<2x16xf32>
      %cst = arith.constant dense<0xFF800000> : vector<2xf32>
      %72 = vector.multi_reduction <maximumf>, %71, %cst [1] : vector<2x16xf32> to vector<2xf32>
      %73 = vector.shape_cast %72 : vector<2xf32> to vector<2x1xf32>
      %74 = vector.broadcast %73 : vector<2x1xf32> to vector<2x16xf32>
      %75 = arith.subf %71, %74 : vector<2x16xf32>
      %76 = math.exp %75 : vector<2x16xf32>
      %cst_39 = arith.constant dense<0.000000e+00> : vector<2xf32>
      %77 = vector.multi_reduction <add>, %76, %cst_39 [1] : vector<2x16xf32> to vector<2xf32>
      %78 = vector.shape_cast %77 : vector<2xf32> to vector<2x1xf32>
      %79 = math.log %78 : vector<2x1xf32>
      %80 = vector.broadcast %79 : vector<2x1xf32> to vector<2x16xf32>
      %81 = arith.subf %75, %80 : vector<2x16xf32>
      %c0_40 = arith.constant 0 : index
      %c0_41 = arith.constant 0 : index
      %82 = vector.load %arg10[%c0_40, %c0_41] : memref<2x16xf32, #tpu.memory_space<vmem>>, vector<2x16xf32>
      %c0_42 = arith.constant 0 : index
      %c0_43 = arith.constant 0 : index
      %83 = vector.load %arg9[%c0_42, %c0_43] : memref<2x16xf32, #tpu.memory_space<vmem>>, vector<2x16xf32>
      %84 = arith.subf %83, %81 : vector<2x16xf32>
      %85 = arith.mulf %82, %84 : vector<2x16xf32>
      %86 = vector.shape_cast %85 : vector<2x16xf32> to vector<1x2x16xf32>
      %cst_44 = arith.constant dense<0.000000e+00> : vector<1xf32>
      %87 = vector.multi_reduction <add>, %86, %cst_44 [1, 2] : vector<1x2x16xf32> to vector<1xf32>
      %88 = vector.shape_cast %87 : vector<1xf32> to vector<1x1x1xf32>
      %89 = vector.extract %88[0, 0, 0] : f32 from vector<1x1x1xf32>
      %90 = vector.broadcast %89 : f32 to vector<1x1xf32>
      %cst_45 = arith.constant 5.000000e-01 : f32
      %91 = vector.broadcast %cst_45 : f32 to vector<1x1xf32>
      %92 = arith.mulf %90, %91 : vector<1x1xf32>
      %c0_46 = arith.constant 0 : index
      %c0_47 = arith.constant 0 : index
      %93 = vector.load %arg6[%c0_46, %c0_47] : memref<1x1xf32, #tpu.memory_space<vmem>>, vector<1x1xf32>
      tpu.vector_store %arg6[%c0_46, %c0_47], %92 {strides = array<i32>} : memref<1x1xf32, #tpu.memory_space<vmem>>, vector<1x1xf32>,
    } else {
    }
    %c0_i32_32 = arith.constant 0 : i32
    %63 = arith.cmpi eq, %arg1, %c0_i32_32 : i32
    %64 = arith.andi %27, %63 : i1
    %65 = arith.extui %64 : i1 to i32
    %c0_i32_33 = arith.constant 0 : i32
    %66 = arith.cmpi ne, %65, %c0_i32_33 : i32
    scf.if %66 {
      %cst = arith.constant 0.000000e+00 : f32
      %69 = vector.broadcast %cst : f32 to vector<2x1xf32>
      %c0_35 = arith.constant 0 : index
      %c0_36 = arith.constant 0 : index
      %70 = vector.load %arg15[%c0_35, %c0_36] : memref<2x1xf32, #tpu.memory_space<vmem>>, vector<2x1xf32>
      tpu.vector_store %arg15[%c0_35, %c0_36], %69 {strides = array<i32>} : memref<2x1xf32, #tpu.memory_space<vmem>>, vector<2x1xf32>,
    } else {
    }
    %67 = arith.extui %27 : i1 to i32
    %c0_i32_34 = arith.constant 0 : i32
    %68 = arith.cmpi ne, %67, %c0_i32_34 : i32
    scf.if %68 {
      %c0_35 = arith.constant 0 : index
      %c0_36 = arith.constant 0 : index
      %69 = vector.load %arg16[%c0_35, %c0_36] : memref<1x1xf32, #tpu.memory_space<vmem>>, vector<1x1xf32>
      %70 = math.sqrt %69 : vector<1x1xf32>
      %cst = arith.constant 9.99999996E-13 : f32
      %71 = vector.broadcast %cst : f32 to vector<1x1xf32>
      %72 = arith.addf %70, %71 : vector<1x1xf32>
      %73 = tpu.reciprocal %72 {approx = true} : vector<1x1xf32> -> vector<1x1xf32>
      %c0_37 = arith.constant 0 : index
      %c0_38 = arith.constant 0 : index
      %74 = vector.load %arg11[%c0_37, %c0_38] : memref<2x16xf32, #tpu.memory_space<vmem>>, vector<2x16xf32>
      %75 = arith.truncf %74 : vector<2x16xf32> to vector<2x16xbf16>
      %cst_39 = arith.constant dense<0.000000e+00> : vector<2x512xf32>
      %76 = tpu.matmul %75, %0, %cst_39 {dimension_numbers = #tpu.dot_dimension_numbers<[1], [0], [0], [1], [0, 0, 1, 1], [], []>} : vector<2x16xbf16>, vector<16x512xbf16>, vector<2x512xf32> -> vector<2x512xf32>
      %77 = arith.index_cast %arg1 : i32 to index
      %c0_40 = arith.constant 0 : index
      %c0_41 = arith.constant 0 : index
      %78 = vector.load %arg12[%77, %c0_40, %c0_41] : memref<2x2x512xf32, #tpu.memory_space<vmem>>, vector<1x2x512xf32>
      %79 = vector.shape_cast %78 : vector<1x2x512xf32> to vector<2x512xf32>
      %80 = vector.broadcast %73 : vector<1x1xf32> to vector<2x512xf32>
      %81 = arith.mulf %79, %80 : vector<2x512xf32>
      %82 = arith.subf %76, %81 : vector<2x512xf32>
      %83 = arith.index_cast %arg1 : i32 to index
      %c0_42 = arith.constant 0 : index
      %c0_43 = arith.constant 0 : index
      %84 = vector.load %arg13[%83, %c0_42, %c0_43] : memref<2x2x512xf32, #tpu.memory_space<vmem>>, vector<1x2x512xf32>
      %85 = vector.shape_cast %84 : vector<1x2x512xf32> to vector<2x512xf32>
      %86 = vector.shape_cast %82 : vector<2x512xf32> to vector<1x2x512xf32>
      tpu.vector_store %arg13[%83, %c0_42, %c0_43], %86 {strides = array<i32>} : memref<2x2x512xf32, #tpu.memory_space<vmem>>, vector<1x2x512xf32>,
      %c0_44 = arith.constant 0 : index
      %c0_45 = arith.constant 0 : index
      %87 = vector.load %arg15[%c0_44, %c0_45] : memref<2x1xf32, #tpu.memory_space<vmem>>, vector<2x1xf32>
      %88 = arith.mulf %82, %82 : vector<2x512xf32>
      %cst_46 = arith.constant dense<0.000000e+00> : vector<2xf32>
      %89 = vector.multi_reduction <add>, %88, %cst_46 [1] : vector<2x512xf32> to vector<2xf32>
      %90 = vector.shape_cast %89 : vector<2xf32> to vector<2x1xf32>
      %91 = arith.addf %87, %90 : vector<2x1xf32>
      %c0_47 = arith.constant 0 : index
      %c0_48 = arith.constant 0 : index
      %92 = vector.load %arg15[%c0_47, %c0_48] : memref<2x1xf32, #tpu.memory_space<vmem>>, vector<2x1xf32>
      tpu.vector_store %arg15[%c0_47, %c0_48], %91 {strides = array<i32>} : memref<2x1xf32, #tpu.memory_space<vmem>>, vector<2x1xf32>,
    } else {
    }
    return
  }
  func.func @transform_0(%arg0: i32, %arg1: i32) -> (i32, i32) {
    %c0_i32 = arith.constant 0 : i32
    %c0_i32_0 = arith.constant 0 : i32
    return %c0_i32, %arg1 : i32, i32
  }
  func.func @transform_1(%arg0: i32, %arg1: i32) -> (i32, i32) {
    %c0_i32 = arith.constant 0 : i32
    %c0_i32_0 = arith.constant 0 : i32
    return %c0_i32, %arg1 : i32, i32
  }
  func.func @transform_2(%arg0: i32, %arg1: i32) -> (i32, i32) {
    %c0_i32 = arith.constant 0 : i32
    %c0_i32_0 = arith.constant 0 : i32
    return %c0_i32, %arg1 : i32, i32
  }
  func.func @transform_3(%arg0: i32, %arg1: i32) -> (i32, i32) {
    %c0_i32 = arith.constant 0 : i32
    %c0_i32_0 = arith.constant 0 : i32
    %c0_i32_1 = arith.constant 0 : i32
    return %c0_i32, %c0_i32_0 : i32, i32
  }
  func.func @transform_4(%arg0: i32, %arg1: i32) -> (i32, i32) {
    %c0_i32 = arith.constant 0 : i32
    %c0_i32_0 = arith.constant 0 : i32
    %c0_i32_1 = arith.constant 0 : i32
    return %c0_i32, %c0_i32_0 : i32, i32
  }
}

</mosaic_0001>

<llo_original>
// kernel: tpu_custom_call.1
$region0: #{tpu_custom_call.1}
  #allocation0 [shape = 'u32[]', space=smem, size = 0x4, offset = 0x4, fixed_abs, tag = 'smem constant byte address 0x4 - core index']
  #allocation1 [shape = 'u32[144,128]{1,0:T(1,128)}', space=vmem, size = 0x12000, scoped, tag = 'internal scratch']
  #allocation2 [shape = 'f32[2,16]{1,0:T(2,128)}', space=vmem, size = 0x400, scoped, tag = 'scratch operand']
  #allocation3 [shape = 'f32[2,16]{1,0:T(2,128)}', space=vmem, size = 0x400, scoped, tag = 'scratch operand']
  #allocation4 [shape = 'f32[2,16]{1,0:T(2,128)}', space=vmem, size = 0x400, scoped, tag = 'scratch operand']
  #allocation5 [shape = 'f32[2,16]{1,0:T(2,128)}', space=vmem, size = 0x400, scoped, tag = 'scratch operand']
  #allocation6 [shape = 'f32[2,16]{1,0:T(2,128)}', space=vmem, size = 0x400, scoped, tag = 'scratch operand']
  #allocation7 [shape = 'f32[2,2,512]{2,1,0:T(2,128)}', space=vmem, size = 0x2000, scoped, tag = 'scratch operand']
  #allocation8 [shape = 'f32[2,2,512]{2,1,0:T(2,128)}', space=vmem, size = 0x2000, scoped, tag = 'scratch operand']
  #allocation9 [shape = 'f32[2,1]{1,0:T(2,128)}', space=vmem, size = 0x400, scoped, tag = 'scratch operand']
  #allocation10 [shape = 'f32[2,1]{1,0:T(2,128)}', space=vmem, size = 0x400, scoped, tag = 'scratch operand']
  #allocation11 [shape = 'f32[1,1]{1,0:T(1,128)}', space=vmem, size = 0x200, scoped, tag = 'scratch operand']
  %s0 = inlined_call_operand.hbm [shape: bf16[2,1024], index: 0, kind: input, shape index: {}]
  %s1 = inlined_call_operand.hbm [shape: f32[2,1024], index: 1, kind: input, shape index: {}]
  %s2 = inlined_call_operand.hbm [shape: bf16[16,1024], index: 2, kind: input, shape index: {}]
  %s3 = inlined_call_operand.vmem [shape: f32[1,16], index: 3, kind: input, shape index: {}]
  %s4 = inlined_call_operand.hbm [shape: f32[1,1], index: 4, kind: output, shape index: {}]
  %s5 = sld [smem:[#allocation0]]
  $region105: #{tpu_custom_call.1} parent=0
    _
  %s7 = ssub.s32 1, %s5
  %s8 = scalar_select 0, %s7, %s5
  $region1: #{tpu_custom_call.1} parent=0
    #allocation12 [shape = 'u8[4096]{0}', space=vmem, size = 0x1000, scoped, tag = 'input window, operand 0']
    #allocation13 [shape = 's32[2]{0}', space=sflag, size = 0x8, scoped, tag = 'scoped memory for tpu_custom_call.1']
    #allocation14 [shape = 's32[2]{0}', space=sflag, size = 0x8, scoped, tag = 'scoped memory for tpu_custom_call.1']
    #allocation15 [shape = 'u8[8192]{0}', space=vmem, size = 0x2000, scoped, tag = 'input window, operand 1']
    #allocation16 [shape = 's32[2]{0}', space=sflag, size = 0x8, scoped, tag = 'scoped memory for tpu_custom_call.1']
    #allocation17 [shape = 'u8[32768]{0}', space=vmem, size = 0x8000, scoped, tag = 'input window, operand 2']
    #allocation18 [shape = 'u8[512]{0}', space=vmem, size = 0x400, scoped, tag = 'output window, operand 0, single buffered']
    %9 = vsyncpa [#allocation13], 0
    %s10 = scalar_lea.sflag [#allocation13], 1
    %11 = vsyncpa %s10, 0
    %12 = vsyncpa [#allocation16], 0
    %s13 = scalar_lea.sflag [#allocation16], 1
    %14 = vsyncpa %s13, 0
    %15 = vsyncpa [#allocation14], 0
    loop: start=0, step=1, limit=10
    $region2: #{tpu_custom_call.1} parent=1 // loop_pre_header
      _
    $region3: #{tpu_custom_call.1} parent=1 // loop_header
      %s17 = sphi 0, %s21
      %p18 = scmp.ge.s32.totalorder %s17, 10
      %s24 = sphi 0, %s36
      %s25 = sphi 0, %s32
      %s26 = sphi 0, %s24
      %s27 = sphi 0, %s25
      %s28 = sphi 0, %s26
      %s29 = sphi 0, %s27
      %s39 = sphi 0, %s41
      %s42 = sphi 0, %s39
      %s43 = sphi 0, %s42
      %s59 = sphi 0, %s43
      %s65 = sphi 0, %s67
      %s68 = sphi 0, %s65
      %s69 = sphi 0, %s68
      %s85 = sphi 0, %s69
      %s91 = sphi 0, %s93
      %s94 = sphi 0, %s91
      %s95 = sphi 0, %s94
      %s111 = sphi 0, %s95
      %s115 = sphi 0, %s115
      %s117 = sphi 0, %s115
      %s118 = sphi 0, %s117
      %s132 = sphi 0, %s118
      %s136 = sphi 0, %s136
      %s138 = sphi 0, %s136
      %s139 = sphi 0, %s138
      %s153 = sphi 0, %s139
    $region4: #{tpu_custom_call.1} parent=1 // loop_header_branch
      %20 = sbr.rel (%p18) target = $region8
    $region5: #{tpu_custom_call.1} parent=1 // loop_body
      %s22 = ssub.s32 %s17, 1
      %s23 = ssub.s32 %s17, 2
      %s30 = sadd.s32 1, %s25
      %p31 = scmp.ge.s32.totalorder %s30, 2
      %s32 = scalar_select %p31, 0, %s30
      %s33 = sadd.s32 1, %s24
      %s34 = scalar_select %p31, %s33, %s24
      %p35 = scmp.ge.s32.totalorder %s34, 4
      %s36 = scalar_select %p35, 0, %s34
      %s37 = ssub.s32 %s25, %s32
      %p38 = scmp.eq.s32.totalorder %s37, 0
      %s40 = sadd.s32 %s39, 1
      %s41 = scalar_select %p38, %s39, %s40
      %p44 = pneg %p38
      %p45 = scmp.eq.s32.totalorder %s17, 7
      %p46 = por %p44, %p45
      %p47 = scmp.ne.s32.totalorder %s39, %s42
      %p48 = scmp.eq.s32.totalorder %s17, 0
      %p49 = por %p47, %p48
      %p50 = scmp.ne.s32.totalorder %s39, %s42
      %p51 = scmp.eq.s32.totalorder %s22, 7
      %p52 = por %p50, %p51
      %p53 = scmp.ne.s32.totalorder %s42, %s43
      %p54 = scmp.eq.s32.totalorder %s22, 0
      %p55 = por %p53, %p54
      %p56 = scmp.ne.s32.totalorder %s42, %s43
      %p57 = scmp.eq.s32.totalorder %s23, 7
      %p58 = por %p56, %p57
      %p60 = scmp.ne.s32.totalorder %s43, %s59
      %p61 = scmp.eq.s32.totalorder %s23, 0
      %p62 = por %p60, %p61
      %s63 = ssub.s32 %s25, %s32
      %p64 = scmp.eq.s32.totalorder %s63, 0
      %s66 = sadd.s32 %s65, 1
      %s67 = scalar_select %p64, %s65, %s66
      %p70 = pneg %p64
      %p71 = scmp.eq.s32.totalorder %s17, 7
      %p72 = por %p70, %p71
      %p73 = scmp.ne.s32.totalorder %s65, %s68
      %p74 = scmp.eq.s32.totalorder %s17, 0
      %p75 = por %p73, %p74
      %p76 = scmp.ne.s32.totalorder %s65, %s68
      %p77 = scmp.eq.s32.totalorder %s22, 7
      %p78 = por %p76, %p77
      %p79 = scmp.ne.s32.totalorder %s68, %s69
      %p80 = scmp.eq.s32.totalorder %s22, 0
      %p81 = por %p79, %p80
      %p82 = scmp.ne.s32.totalorder %s68, %s69
      %p83 = scmp.eq.s32.totalorder %s23, 7
      %p84 = por %p82, %p83
      %p86 = scmp.ne.s32.totalorder %s69, %s85
      %p87 = scmp.eq.s32.totalorder %s23, 0
      %p88 = por %p86, %p87
      %s89 = ssub.s32 %s25, %s32
      %p90 = scmp.eq.s32.totalorder %s89, 0
      %s92 = sadd.s32 %s91, 1
      %s93 = scalar_select %p90, %s91, %s92
      %p96 = pneg %p90
      %p97 = scmp.eq.s32.totalorder %s17, 7
      %p98 = por %p96, %p97
      %p99 = scmp.ne.s32.totalorder %s91, %s94
      %p100 = scmp.eq.s32.totalorder %s17, 0
      %p101 = por %p99, %p100
      %p102 = scmp.ne.s32.totalorder %s91, %s94
      %p103 = scmp.eq.s32.totalorder %s22, 7
      %p104 = por %p102, %p103
      %p105 = scmp.ne.s32.totalorder %s94, %s95
      %p106 = scmp.eq.s32.totalorder %s22, 0
      %p107 = por %p105, %p106
      %p108 = scmp.ne.s32.totalorder %s94, %s95
      %p109 = scmp.eq.s32.totalorder %s23, 7
      %p110 = por %p108, %p109
      %p112 = scmp.ne.s32.totalorder %s95, %s111
      %p113 = scmp.eq.s32.totalorder %s23, 0
      %p114 = por %p112, %p113
      %s116 = sadd.s32 %s115, 1
      %p119 = scmp.eq.s32.totalorder %s17, 7
      %p120 = scmp.ne.s32.totalorder %s115, %s117
      %p121 = scmp.eq.s32.totalorder %s17, 0
      %p122 = por %p120, %p121
      %p123 = scmp.ne.s32.totalorder %s115, %s117
      %p124 = scmp.eq.s32.totalorder %s22, 7
      %p125 = por %p123, %p124
      %p126 = scmp.ne.s32.totalorder %s117, %s118
      %p127 = scmp.eq.s32.totalorder %s22, 0
      %p128 = por %p126, %p127
      %p129 = scmp.ne.s32.totalorder %s117, %s118
      %p130 = scmp.eq.s32.totalorder %s23, 7
      %p131 = por %p129, %p130
      %p133 = scmp.ne.s32.totalorder %s118, %s132
      %p134 = scmp.eq.s32.totalorder %s23, 0
      %p135 = por %p133, %p134
      %s137 = sadd.s32 %s136, 1
      %p140 = scmp.eq.s32.totalorder %s17, 7
      %p141 = scmp.ne.s32.totalorder %s136, %s138
      %p142 = scmp.eq.s32.totalorder %s17, 0
      %p143 = por %p141, %p142
      %p144 = scmp.ne.s32.totalorder %s136, %s138
      %p145 = scmp.eq.s32.totalorder %s22, 7
      %p146 = por %p144, %p145
      %p147 = scmp.ne.s32.totalorder %s138, %s139
      %p148 = scmp.eq.s32.totalorder %s22, 0
      %p149 = por %p147, %p148
      %p150 = scmp.ne.s32.totalorder %s138, %s139
      %p151 = scmp.eq.s32.totalorder %s23, 7
      %p152 = por %p150, %p151
      %p154 = scmp.ne.s32.totalorder %s139, %s153
      %p155 = scmp.eq.s32.totalorder %s23, 0
      %p156 = por %p154, %p155
      %p157 = scmp.le.s32.totalorder 1, %s17
      %p158 = scmp.lt.s32.totalorder %s17, 9
      %p159 = pnand %p157, %p158
      %p160 = pneg %p159
      // Predicated region
      $region9: #{tpu_custom_call.1} parent=5 // pred_check
        _
      $region10: #{tpu_custom_call.1} parent=5 // pred_check_branch
        %162 = sbr.rel (%p159) target = $region12
      $region11: #{tpu_custom_call.1} parent=5 // pred_region
        %s163 = ssub.s32 %s17, 1
        // Predicated region
        $region13: #{tpu_custom_call.1} parent=11 // pred_check
          %p164 = pneg %p128
        $region14: #{tpu_custom_call.1} parent=11 // pred_check_branch
          %166 = sbr.rel (%p164) target = $region16
        $region15: #{tpu_custom_call.1} parent=11 // pred_region
          _
        $region16: #{tpu_custom_call.1} parent=11 // pred_fallthru
          _
      $region12: #{tpu_custom_call.1} parent=5 // pred_fallthru
        _
      %p167 = scmp.lt.s32.totalorder %s17, 8
      // Predicated region
      $region17: #{tpu_custom_call.1} parent=5 // pred_check
        %p168 = pneg %p167
      $region18: #{tpu_custom_call.1} parent=5 // pred_check_branch
        %170 = sbr.rel (%p168) target = $region20
      $region19: #{tpu_custom_call.1} parent=5 // pred_region
        // Predicated region
        $region21: #{tpu_custom_call.1} parent=19 // pred_check
          %p171 = pneg %p49
        $region22: #{tpu_custom_call.1} parent=19 // pred_check_branch
          %173 = sbr.rel (%p171) target = $region24
        $region23: #{tpu_custom_call.1} parent=19 // pred_region
          %s174 = sand.u32 %s39, 1
          %s175 = scalar_lea.sflag [#allocation13], %s174
          %s176 = sand.u32 %s39, 1
          %s177 = smul.addr %s176, 4
          %s178 = scalar_lea.vmem [#allocation12], %s177
          %s179 = smul.u32 4, %s25
          %s181 = ssub.s32 64, 64
          %182 = vsyncadd %s175, %s181
          %s183 = smul.addr %s179, 16
          %s184 = scalar_lea.hbm %s0, %s183
          %s186 = sshll.u32 %s178, 4
          %s187 = int_to_ptr.vmem [resolvable:$true] %s186
          %189 = dma.hbm_to_vmem [thread:$0]  %s184, 64, %s187, %s175
        $region24: #{tpu_custom_call.1} parent=19 // pred_fallthru
          _
        // Predicated region
        $region25: #{tpu_custom_call.1} parent=19 // pred_check
          %p190 = pneg %p75
        $region26: #{tpu_custom_call.1} parent=19 // pred_check_branch
          %192 = sbr.rel (%p190) target = $region28
        $region27: #{tpu_custom_call.1} parent=19 // pred_region
          %s193 = sand.u32 %s17, 1
          %s194 = scalar_lea.sflag [#allocation16], %s193
          %s195 = sand.u32 %s65, 1
          %s196 = smul.addr %s195, 8
          %s197 = scalar_lea.vmem [#allocation15], %s196
          %s198 = smul.u32 4, %s25
          %s200 = ssub.s32 128, 128
          %201 = vsyncadd %s194, %s200
          %s202 = smul.addr %s198, 32
          %s203 = scalar_lea.hbm %s1, %s202
          %s205 = sshll.u32 %s197, 4
          %s206 = int_to_ptr.vmem [resolvable:$true] %s205
          %208 = dma.hbm_to_vmem [thread:$0]  %s203, 128, %s206, %s194
        $region28: #{tpu_custom_call.1} parent=19 // pred_fallthru
          _
        // Predicated region
        $region29: #{tpu_custom_call.1} parent=19 // pred_check
          %p209 = pneg %p101
        $region30: #{tpu_custom_call.1} parent=19 // pred_check_branch
          %211 = sbr.rel (%p209) target = $region32
        $region31: #{tpu_custom_call.1} parent=19 // pred_region
          %s212 = sand.u32 %s17, 1
          %s213 = scalar_lea.sflag [#allocation16], %s212
          %s214 = sand.u32 %s91, 1
          %s215 = smul.addr %s214, 32
          %s216 = scalar_lea.vmem [#allocation17], %s215
          %s217 = smul.u32 4, %s25
          %s219 = ssub.s32 512, 512
          %220 = vsyncadd %s213, %s219
          %s221 = smul.addr %s217, 64
          %s222 = scalar_lea.hbm %s2, %s221
          %s223 = sshll.u32 %s216, 4
          %s224 = int_to_ptr.vmem [resolvable:$true] %s223
          %229 = dma.hbm_to_vmem [thread:$0]  %s222, 512, %s224, %s213, 512, 256, 16
        $region32: #{tpu_custom_call.1} parent=19 // pred_fallthru
          _
      $region20: #{tpu_custom_call.1} parent=5 // pred_fallthru
        _
      %p230 = scmp.le.s32.totalorder 1, %s17
      %p231 = scmp.lt.s32.totalorder %s17, 9
      %p232 = pnand %p230, %p231
      %p233 = pneg %p232
      // Predicated region
      $region33: #{tpu_custom_call.1} parent=5 // pred_check
        _
      $region34: #{tpu_custom_call.1} parent=5 // pred_check_branch
        %235 = sbr.rel (%p232) target = $region36
      $region35: #{tpu_custom_call.1} parent=5 // pred_region
        %s236 = ssub.s32 %s17, 1
        %s237 = sand.u32 %s42, 1
        %s238 = scalar_lea.sflag [#allocation13], %s237
        %s239 = sand.u32 %s42, 1
        %s240 = smul.addr %s239, 4
        %s241 = scalar_lea.vmem [#allocation12], %s240
        // Predicated region
        $region37: #{tpu_custom_call.1} parent=35 // pred_check
          %p242 = pneg %p55
        $region38: #{tpu_custom_call.1} parent=35 // pred_check_branch
          %244 = sbr.rel (%p242) target = $region40
        $region39: #{tpu_custom_call.1} parent=35 // pred_region
          %245 = dma.done %s238, 64
        $region40: #{tpu_custom_call.1} parent=35 // pred_fallthru
          _
        %s246 = sand.u32 %s22, 1
        %s247 = scalar_lea.sflag [#allocation16], %s246
        %s248 = sand.u32 %s68, 1
        %s249 = smul.addr %s248, 8
        %s250 = scalar_lea.vmem [#allocation15], %s249
        // Predicated region
        $region41: #{tpu_custom_call.1} parent=35 // pred_check
          %p251 = pneg %p81
        $region42: #{tpu_custom_call.1} parent=35 // pred_check_branch
          %253 = sbr.rel (%p251) target = $region44
        $region43: #{tpu_custom_call.1} parent=35 // pred_region
          %254 = dma.done %s247, 128
        $region44: #{tpu_custom_call.1} parent=35 // pred_fallthru
          _
        %s255 = sand.u32 %s22, 1
        %s256 = scalar_lea.sflag [#allocation16], %s255
        %s257 = sand.u32 %s94, 1
        %s258 = smul.addr %s257, 32
        %s259 = scalar_lea.vmem [#allocation17], %s258
        // Predicated region
        $region45: #{tpu_custom_call.1} parent=35 // pred_check
          %p260 = pneg %p107
        $region46: #{tpu_custom_call.1} parent=35 // pred_check_branch
          %262 = sbr.rel (%p260) target = $region48
        $region47: #{tpu_custom_call.1} parent=35 // pred_region
          %263 = dma.done %s256, 512
        $region48: #{tpu_custom_call.1} parent=35 // pred_fallthru
          _
        %s264 = sand.u32 %s42, 1
        %s265 = scalar_lea.sflag [#allocation13], %s264
        %s266 = sand.u32 %s42, 1
        %s267 = smul.addr %s266, 4
        %s268 = scalar_lea.vmem [#allocation12], %s267
        %p269 = pneg %p55
        %p270 = pneg %p52
        %s271 = sand.u32 %s22, 1
        %s272 = scalar_lea.sflag [#allocation16], %s271
        %s273 = sand.u32 %s68, 1
        %s274 = smul.addr %s273, 8
        %s275 = scalar_lea.vmem [#allocation15], %s274
        %p276 = pneg %p81
        %p277 = pneg %p78
        %s278 = sand.u32 %s22, 1
        %s279 = scalar_lea.sflag [#allocation16], %s278
        %s280 = sand.u32 %s94, 1
        %s281 = smul.addr %s280, 32
        %s282 = scalar_lea.vmem [#allocation17], %s281
        %p283 = pneg %p107
        %p284 = pneg %p104
        %p285 = pneg %p128
        %p286 = pneg %p125
        %p287 = pneg %p149
        %p288 = pneg %p146
        %s289 = smul.u32 4, %s27
        %s290 = smul.u32 4, %s27
        %s291 = smul.u32 4, %s27
        %v293 = vld [vmem:[%s259] sm:$0xff]
        %v294 = vld [vmem:[%s259 + $0x8] sm:$0xff]
        %v295 = vld [vmem:[%s259 + $0x10] sm:$0xff]
        %v296 = vld [vmem:[%s259 + $0x18] sm:$0xff]
        %p297 = scmp.eq.s32.totalorder %s27, 1
        %p298 = scmp.ge.s32.totalorder %s26, 1
        %p299 = scmp.lt.s32.totalorder %s26, 0
        %s300 = ssub.s32 0, %s26
        %s301 = scalar_select %p299, %s300, %s26
        %s302 = sand.u32 %s301, 1
        %s303 = ssub.s32 0, %s302
        %s304 = scalar_select %p299, %s303, %s302
        %p305 = scmp.ne.s32.totalorder %s304, 0
        %p306 = scmp.lt.s32.totalorder %s304, 0
        %p307 = pnand %p306, %p305
        %p308 = pneg %p307
        %s309 = sadd.s32 %s304, 2
        %s310 = scalar_select %p308, %s309, %s304
        %p311 = scmp.eq.s32.totalorder %s310, 1
        %p312 = pnand %p298, %p311
        %p313 = pneg %p312
        %p314 = scmp.ge.s32.totalorder %s26, 2
        %p315 = scmp.eq.s32.totalorder %s310, 0
        %p316 = pnand %p314, %p315
        %p317 = pneg %p316
        %p318 = scmp.eq.s32.totalorder %s26, 0
        %p319 = scmp.eq.s32.totalorder %s27, 0
        %p320 = pnand %p318, %p319
        %p321 = pneg %p320
        // Predicated region
        $region49: #{tpu_custom_call.1} parent=35 // pred_check
          _
        $region50: #{tpu_custom_call.1} parent=35 // pred_check_branch
          %323 = sbr.rel (%p320) target = $region52
        $region51: #{tpu_custom_call.1} parent=35 // pred_region
          %vm324 = vcmask 123904
          %325 = vst.msk [vmem:[#allocation2] sm:$0x3] %vm324, 0.0
          %vm326 = vcmask 1024
          %327 = vst.msk [vmem:[#allocation9] sm:$0x3] %vm326, 0.0
          %vm328 = vcmask 0
          %329 = vst.msk [vmem:[#allocation18] sm:$0x1] %vm328, 0.0
        $region52: #{tpu_custom_call.1} parent=35 // pred_fallthru
          _
        // Predicated region
        $region53: #{tpu_custom_call.1} parent=35 // pred_check
          %p330 = pneg %p318
        $region54: #{tpu_custom_call.1} parent=35 // pred_check_branch
          %332 = sbr.rel (%p330) target = $region56
        $region55: #{tpu_custom_call.1} parent=35 // pred_region
          %v333 = vld [vmem:[#allocation2] sm:$0x3]
          %v334 = vld [vmem:[%s241] sm:$0xf]
          %v337 = vunpack.c.l.s4 1966171168
          %v338 = vunpack.c.0.s8 %v337
          %v339 = vlaneseq
          %v340 = vshrl.u32 %v339, 7
          %v341 = vsub.s32 %v338, %v340
          %v342 = vrot.slane %v334, %v341
          %v343 = vcombine.high %v342, %v342
          %v345 = vunpack.c.l.s4 1966171168
          %v346 = vunpack.c.0.s8 %v345
          %v347 = vlaneseq
          %v348 = vshrl.u32 %v347, 7
          %v349 = vsub.s32 %v346, %v348
          %v350 = vrot.slane %v342, %v349
          %v352 = vunpack.c.l.s4 1966171168
          %v353 = vunpack.c.0.s8 %v352
          %v354 = vlaneseq
          %v355 = vshrl.u32 %v354, 7
          %v356 = vsub.s32 %v353, %v355
          %v357 = vrot.slane %v343, %v356
          %v358 = vcombine.high %v350, %v350
          %v359 = vcombine.high %v357, %v357
          %v368 = vunpack.c.l.b16 %v293
          %v369 = vunpack.c.h.b16 %v293
          %v370 = vunpack.c.l.b16 %v294
          %v371 = vunpack.c.h.b16 %v294
          %v372 = vunpack.c.l.b16 %v295
          %v373 = vunpack.c.h.b16 %v295
          %v374 = vunpack.c.l.b16 %v296
          %v375 = vunpack.c.h.b16 %v296
          %v376 = vpack.c.b16 %v372, %v368
          %v377 = vpack.c.b16 %v373, %v369
          %v378 = vpack.c.b16 %v374, %v370
          %v379 = vpack.c.b16 %v375, %v371
          %384 = vmatprep.subr.bf16.mxu0 %v377
          %385 = vmatpush1.bf16.xpose.msra.mxu0 %v376
          %386 = vmatprep.subr.bf16.mxu0 0
          %387 = vmatpush1.bf16.xpose.msra.mxu0 0
          %388 = vmatprep.subr.bf16.mxu0 0
          %389 = vmatpush1.bf16.xpose.msra.mxu0 0
          %390 = vmatprep.subr.bf16.mxu0 0
          %391 = vmatpush1.bf16.xpose.msra.mxu0 0
          %392 = vmatprep.subr.bf16.mxu0 0
          %393 = vmatpush1.bf16.xpose.msra.mxu0 0
          %394 = vmatprep.subr.bf16.mxu0 0
          %395 = vmatpush1.bf16.xpose.msra.mxu0 0
          %396 = vmatprep.subr.bf16.mxu0 0
          %397 = vmatpush1.bf16.xpose.msra.mxu0 0
          %398 = vmatprep.subr.bf16.mxu0 0
          %399 = vmatpush1.bf16.xpose.msra.mxu0 0
          %400 = vmatprep.subr.bf16.mxu0 0
          %401 = vmatpush1.bf16.xpose.msra.mxu0 0
          %402 = vmatprep.subr.bf16.mxu0 0
          %403 = vmatpush1.bf16.xpose.msra.mxu0 0
          %404 = vmatprep.subr.bf16.mxu0 0
          %405 = vmatpush1.bf16.xpose.msra.mxu0 0
          %406 = vmatprep.subr.bf16.mxu0 0
          %407 = vmatpush1.bf16.xpose.msra.mxu0 0
          %408 = vmatprep.subr.bf16.mxu0 0
          %409 = vmatpush1.bf16.xpose.msra.mxu0 0
          %410 = vmatprep.subr.bf16.mxu0 0
          %411 = vmatpush1.bf16.xpose.msra.mxu0 0
          %412 = vmatprep.subr.bf16.mxu0 0
          %413 = vmatpush1.bf16.xpose.msra.mxu0 0
          %414 = vmatprep.subr.bf16.mxu0 0
          %415 = vmatpush1.bf16.xpose.msra.mxu0 0
          %416 = vmatprep.mubr.bf16.mxu0 %v357
          %417 = vmatmul.mubr.bf16.gmra.mrb[0].mxu0 %v350
          %v418 = vpop.f32.mrb[0].mxu0
          %v419 = vadd.f32 0.0, %v418
          %v420 = vpop.f32.mrb[0].mxu0
          %v421 = vpop.f32.mrb[0].mxu0
          %v422 = vpop.f32.mrb[0].mxu0
          %423 = vdwg.mxu0
          %424 = vmatprep.subr.bf16.mxu0 %v379
          %425 = vmatpush1.bf16.xpose.msra.mxu0 %v378
          %426 = vmatprep.subr.bf16.mxu0 0
          %427 = vmatpush1.bf16.xpose.msra.mxu0 0
          %428 = vmatprep.subr.bf16.mxu0 0
          %429 = vmatpush1.bf16.xpose.msra.mxu0 0
          %430 = vmatprep.subr.bf16.mxu0 0
          %431 = vmatpush1.bf16.xpose.msra.mxu0 0
          %432 = vmatprep.subr.bf16.mxu0 0
          %433 = vmatpush1.bf16.xpose.msra.mxu0 0
          %434 = vmatprep.subr.bf16.mxu0 0
          %435 = vmatpush1.bf16.xpose.msra.mxu0 0
          %436 = vmatprep.subr.bf16.mxu0 0
          %437 = vmatpush1.bf16.xpose.msra.mxu0 0
          %438 = vmatprep.subr.bf16.mxu0 0
          %439 = vmatpush1.bf16.xpose.msra.mxu0 0
          %440 = vmatprep.subr.bf16.mxu0 0
          %441 = vmatpush1.bf16.xpose.msra.mxu0 0
          %442 = vmatprep.subr.bf16.mxu0 0
          %443 = vmatpush1.bf16.xpose.msra.mxu0 0
          %444 = vmatprep.subr.bf16.mxu0 0
          %445 = vmatpush1.bf16.xpose.msra.mxu0 0
          %446 = vmatprep.subr.bf16.mxu0 0
          %447 = vmatpush1.bf16.xpose.msra.mxu0 0
          %448 = vmatprep.subr.bf16.mxu0 0
          %449 = vmatpush1.bf16.xpose.msra.mxu0 0
          %450 = vmatprep.subr.bf16.mxu0 0
          %451 = vmatpush1.bf16.xpose.msra.mxu0 0
          %452 = vmatprep.subr.bf16.mxu0 0
          %453 = vmatpush1.bf16.xpose.msra.mxu0 0
          %454 = vmatprep.subr.bf16.mxu0 0
          %455 = vmatpush1.bf16.xpose.msra.mxu0 0
          %456 = vmatprep.mubr.bf16.mxu0 %v359
          %457 = vmatmul.mubr.bf16.gmra.mrb[0].mxu0 %v358
          %v458 = vpop.f32.mrb[0].mxu0
          %v459 = vadd.f32 %v419, %v458
          %v460 = vpop.f32.mrb[0].mxu0
          %v461 = vpop.f32.mrb[0].mxu0
          %v462 = vpop.f32.mrb[0].mxu0
          %463 = vdwg.mxu0
          %v464 = vadd.f32 %v333, %v459
          %vm465 = vcmask 123904
          %466 = vst.msk [vmem:[#allocation2] sm:$0x3] %vm465, %v464
          %v467 = vld [vmem:[%s250] sm:$0xff]
          %v468 = vld [vmem:[#allocation9] sm:$0x3]
          %v469 = vmul.f32 %v467, %v467
          %v471 = vcombine.high %v469, %v469
          %v473 = vunpack.c.l.s4 1983009808
          %v474 = vunpack.c.0.s8 %v473
          %v475 = vlaneseq
          %v476 = vshrl.u32 %v475, 7
          %v477 = vsub.s32 %v474, %v476
          %v478 = vrot.slane %v469, %v477
          %v480 = vunpack.c.l.s4 1983009808
          %v481 = vunpack.c.0.s8 %v480
          %v482 = vlaneseq
          %v483 = vshrl.u32 %v482, 7
          %v484 = vsub.s32 %v481, %v483
          %v485 = vrot.slane %v471, %v484
          %v486 = vcombine.high %v478, %v478
          %v487 = vcombine.high %v485, %v485
          %vm492 = vcmask 1041408
          %v493 = vsel %vm492, %v478, 0.0
          %v494 = vsel %vm492, %v486, 0.0
          %v495 = vadd.f32 %v493, %v494
          %v496 = vsel %vm492, %v485, 0.0
          %v497 = vadd.f32 %v495, %v496
          %v498 = vsel %vm492, %v487, 0.0
          %v499 = vadd.f32 %v497, %v498
          %500 = vadd.xlane.f32.xlu0 %v499
          %v501 = vpop.xlane.xlu0 %500
          %v502 = vadd.f32 %v468, %v501
          %vm503 = vcmask 1024
          %504 = vst.msk [vmem:[#allocation9] sm:$0x3] %vm503, %v502
        $region56: #{tpu_custom_call.1} parent=35 // pred_fallthru
          _
        %p505 = pnand %p318, %p297
        %p506 = pneg %p505
        // Predicated region
        $region57: #{tpu_custom_call.1} parent=35 // pred_check
          _
        $region58: #{tpu_custom_call.1} parent=35 // pred_check_branch
          %508 = sbr.rel (%p505) target = $region60
        $region59: #{tpu_custom_call.1} parent=35 // pred_region
          %v509 = vld [vmem:[#allocation2] sm:$0x3]
          %v510 = vld [vmem:[%s3] sm:$0x1]
          %v512 = vlaneseq
          %v513 = vshrl.u32 %v512, 7
          %v514 = vsub.s32 0, %v513
          %v515 = vrot.slane %v510, %v514
          %v517 = vadd.f32 %v509, %v515
          %vm518 = vcmask 123904
          %519 = vst.msk [vmem:[#allocation2] sm:$0x3] %vm518, %v517
          %v520 = vsel %vm518, %v517, -inf
          %521 = vmax.xlane.f32.xlu0 %v520
          %v522 = vpop.xlane.xlu0 %521
          %v523 = vsub.f32 %v517, %v522
          %v524 = vmul.f32 %v523, 1.442695
          %v525 = vpow.pop %v524
          %v526 = vsel %vm518, %v525, 0.0
          %527 = vadd.xlane.f32.xlu0 %v526
          %v528 = vpop.xlane.xlu0 %527
          %v529 = vlog2.pop %v528
          %v530 = vmul.f32 %v529, 0.6931472
          %v531 = vsub.f32 %v523, %v530
          %532 = vst.msk [vmem:[#allocation4] sm:$0x3] %vm518, %v531
          %v533 = vmul.f32 %v531, 1.442695
          %v534 = vpow.pop %v533
          %535 = vst.msk [vmem:[#allocation5] sm:$0x3] %vm518, %v534
        $region60: #{tpu_custom_call.1} parent=35 // pred_fallthru
          _
        %p536 = pnand %p313, %p319
        %p537 = pneg %p536
        // Predicated region
        $region61: #{tpu_custom_call.1} parent=35 // pred_check
          _
        $region62: #{tpu_custom_call.1} parent=35 // pred_check_branch
          %539 = sbr.rel (%p536) target = $region64
        $region63: #{tpu_custom_call.1} parent=35 // pred_region
          %vm540 = vcmask 123904
          %541 = vst.msk [vmem:[#allocation3] sm:$0x3] %vm540, 0.0
          %vm542 = vcmask 0
          %543 = vst.msk [vmem:[#allocation11] sm:$0x1] %vm542, 0.0
        $region64: #{tpu_custom_call.1} parent=35 // pred_fallthru
          _
        %p544 = scmp.eq.s32.totalorder %s26, 1
        // Predicated region
        $region65: #{tpu_custom_call.1} parent=35 // pred_check
          %p545 = pneg %p544
        $region66: #{tpu_custom_call.1} parent=35 // pred_check_branch
          %547 = sbr.rel (%p545) target = $region68
        $region67: #{tpu_custom_call.1} parent=35 // pred_region
          %v548 = vld [vmem:[#allocation9] sm:$0x3]
          %v549 = vrsqrt.pop %v548
          %v550 = vmul.f32 %v548, %v549
          %vm551 = vcmp.eq.f32.partialorder %v548, inf
          %v552 = vsel %vm551, %v548, %v550
          %vm553 = vcmp.eq.f32.partialorder %v548, 0.0
          %v554 = vand.u32 %v548, 2147483648
          %v555 = vsel %vm553, %v554, %v552
          %v556 = vadd.f32 %v555, 1e-08
          %v557 = vrcp.pop %v556
          %v558 = vld [vmem:[%s250] sm:$0xff]
          %560 = vset.pattern.permute.xlu0 0
          %561 = vperm.xlu0 %560, %v557
          %v562 = vpop.permute.xlu0 %561
          %v564 = vunpack.c.l.s4 269488144
          %v565 = vunpack.c.0.s8 %v564
          %v566 = vlaneseq
          %v567 = vshrl.u32 %v566, 7
          %v568 = vsub.s32 %v565, %v567
          %v569 = vrot.slane %v562, %v568
          %v571 = vmul.f32 %v558, %v569
          %s572 = smul.u32 %s27, 4
          %s573 = smul.addr %s572, 2
          %s574 = scalar_lea.vmem [#allocation7], %s573
          %575 = vst [vmem:[%s574] sm:$0xff] %v571
        $region68: #{tpu_custom_call.1} parent=35 // pred_fallthru
          _
        %p576 = scmp.gt.s32.totalorder %s26, 1
        %p577 = pnand %p313, %p576
        %p578 = pneg %p577
        // Predicated region
        $region69: #{tpu_custom_call.1} parent=35 // pred_check
          _
        $region70: #{tpu_custom_call.1} parent=35 // pred_check_branch
          %580 = sbr.rel (%p577) target = $region72
        $region71: #{tpu_custom_call.1} parent=35 // pred_region
          %v581 = vld [vmem:[#allocation10] sm:$0x3]
          %v582 = vrsqrt.pop %v581
          %v583 = vmul.f32 %v581, %v582
          %vm584 = vcmp.eq.f32.partialorder %v581, inf
          %v585 = vsel %vm584, %v581, %v583
          %vm586 = vcmp.eq.f32.partialorder %v581, 0.0
          %v587 = vand.u32 %v581, 2147483648
          %v588 = vsel %vm586, %v587, %v585
          %v589 = vadd.f32 %v588, 1e-08
          %v590 = vrcp.pop %v589
          %s591 = smul.u32 %s27, 4
          %s592 = smul.addr %s591, 2
          %s593 = scalar_lea.vmem [#allocation7], %s592
          %v594 = vld [vmem:[%s593] sm:$0xff]
          %s595 = smul.addr %s591, 2
          %s596 = scalar_lea.vmem [#allocation8], %s595
          %v597 = vld [vmem:[%s596] sm:$0xff]
          %599 = vset.pattern.permute.xlu0 0
          %600 = vperm.xlu0 %599, %v590
          %v601 = vpop.permute.xlu0 %600
          %v603 = vunpack.c.l.s4 269488144
          %v604 = vunpack.c.0.s8 %v603
          %v605 = vlaneseq
          %v606 = vshrl.u32 %v605, 7
          %v607 = vsub.s32 %v604, %v606
          %v608 = vrot.slane %v601, %v607
          %v610 = vmul.f32 %v597, %v608
          %v611 = vadd.f32 %v594, %v610
          %612 = vst [vmem:[%s593] sm:$0xff] %v611
        $region72: #{tpu_custom_call.1} parent=35 // pred_fallthru
          _
        // Predicated region
        $region73: #{tpu_custom_call.1} parent=35 // pred_check
          _
        $region74: #{tpu_custom_call.1} parent=35 // pred_check_branch
          %614 = sbr.rel (%p312) target = $region76
        $region75: #{tpu_custom_call.1} parent=35 // pred_region
          %s615 = smul.u32 %s27, 4
          %s616 = smul.addr %s615, 2
          %s617 = scalar_lea.vmem [#allocation7], %s616
          %v618 = vld [vmem:[%s617] sm:$0xff]
          %v619 = vld [vmem:[#allocation3] sm:$0x3]
          %v621 = vcombine.high %v618, %v618
          %v623 = vunpack.c.l.s4 1983009808
          %v624 = vunpack.c.0.s8 %v623
          %v625 = vlaneseq
          %v626 = vshrl.u32 %v625, 7
          %v627 = vsub.s32 %v624, %v626
          %v628 = vrot.slane %v618, %v627
          %v630 = vunpack.c.l.s4 1983009808
          %v631 = vunpack.c.0.s8 %v630
          %v632 = vlaneseq
          %v633 = vshrl.u32 %v632, 7
          %v634 = vsub.s32 %v631, %v633
          %v635 = vrot.slane %v621, %v634
          %v636 = vcombine.high %v628, %v628
          %v637 = vcombine.high %v635, %v635
          %v642 = vpack.c.bf16 %v628, %v628
          %v643 = vpack.c.bf16 %v636, %v636
          %v644 = vpack.c.bf16 %v635, %v635
          %v645 = vpack.c.bf16 %v637, %v637
          %v650 = vunpack.c.l.b16 %v293
          %v651 = vunpack.c.h.b16 %v293
          %v652 = vunpack.c.l.b16 %v294
          %v653 = vunpack.c.h.b16 %v294
          %v654 = vunpack.c.l.b16 %v295
          %v655 = vunpack.c.h.b16 %v295
          %v656 = vunpack.c.l.b16 %v296
          %v657 = vunpack.c.h.b16 %v296
          %v658 = vpack.c.b16 %v654, %v650
          %v659 = vpack.c.b16 %v655, %v651
          %v660 = vpack.c.b16 %v656, %v652
          %v661 = vpack.c.b16 %v657, %v653
          %666 = vmatprep.subr.bf16.mxu0 %v659
          %667 = vmatpush1.bf16.xpose.msra.mxu0 %v658
          %668 = vmatprep.subr.bf16.mxu0 0
          %669 = vmatpush1.bf16.xpose.msra.mxu0 0
          %670 = vmatprep.subr.bf16.mxu0 0
          %671 = vmatpush1.bf16.xpose.msra.mxu0 0
          %672 = vmatprep.subr.bf16.mxu0 0
          %673 = vmatpush1.bf16.xpose.msra.mxu0 0
          %674 = vmatprep.subr.bf16.mxu0 0
          %675 = vmatpush1.bf16.xpose.msra.mxu0 0
          %676 = vmatprep.subr.bf16.mxu0 0
          %677 = vmatpush1.bf16.xpose.msra.mxu0 0
          %678 = vmatprep.subr.bf16.mxu0 0
          %679 = vmatpush1.bf16.xpose.msra.mxu0 0
          %680 = vmatprep.subr.bf16.mxu0 0
          %681 = vmatpush1.bf16.xpose.msra.mxu0 0
          %682 = vmatprep.subr.bf16.mxu0 0
          %683 = vmatpush1.bf16.xpose.msra.mxu0 0
          %684 = vmatprep.subr.bf16.mxu0 0
          %685 = vmatpush1.bf16.xpose.msra.mxu0 0
          %686 = vmatprep.subr.bf16.mxu0 0
          %687 = vmatpush1.bf16.xpose.msra.mxu0 0
          %688 = vmatprep.subr.bf16.mxu0 0
          %689 = vmatpush1.bf16.xpose.msra.mxu0 0
          %690 = vmatprep.subr.bf16.mxu0 0
          %691 = vmatpush1.bf16.xpose.msra.mxu0 0
          %692 = vmatprep.subr.bf16.mxu0 0
          %693 = vmatpush1.bf16.xpose.msra.mxu0 0
          %694 = vmatprep.subr.bf16.mxu0 0
          %695 = vmatpush1.bf16.xpose.msra.mxu0 0
          %696 = vmatprep.subr.bf16.mxu0 0
          %697 = vmatpush1.bf16.xpose.msra.mxu0 0
          %698 = vmatprep.mubr.bf16.mxu0 %v643
          %699 = vmatmul.mubr.bf16.gmra.mrb[0].mxu0 %v642
          %v700 = vpop.f32.mrb[0].mxu0
          %v701 = vadd.f32 0.0, %v700
          %v702 = vpop.f32.mrb[0].mxu0
          %v703 = vpop.f32.mrb[0].mxu0
          %v704 = vpop.f32.mrb[0].mxu0
          %705 = vdwg.mxu0
          %706 = vmatprep.subr.bf16.mxu0 %v661
          %707 = vmatpush1.bf16.xpose.msra.mxu0 %v660
          %708 = vmatprep.subr.bf16.mxu0 0
          %709 = vmatpush1.bf16.xpose.msra.mxu0 0
          %710 = vmatprep.subr.bf16.mxu0 0
          %711 = vmatpush1.bf16.xpose.msra.mxu0 0
          %712 = vmatprep.subr.bf16.mxu0 0
          %713 = vmatpush1.bf16.xpose.msra.mxu0 0
          %714 = vmatprep.subr.bf16.mxu0 0
          %715 = vmatpush1.bf16.xpose.msra.mxu0 0
          %716 = vmatprep.subr.bf16.mxu0 0
          %717 = vmatpush1.bf16.xpose.msra.mxu0 0
          %718 = vmatprep.subr.bf16.mxu0 0
          %719 = vmatpush1.bf16.xpose.msra.mxu0 0
          %720 = vmatprep.subr.bf16.mxu0 0
          %721 = vmatpush1.bf16.xpose.msra.mxu0 0
          %722 = vmatprep.subr.bf16.mxu0 0
          %723 = vmatpush1.bf16.xpose.msra.mxu0 0
          %724 = vmatprep.subr.bf16.mxu0 0
          %725 = vmatpush1.bf16.xpose.msra.mxu0 0
          %726 = vmatprep.subr.bf16.mxu0 0
          %727 = vmatpush1.bf16.xpose.msra.mxu0 0
          %728 = vmatprep.subr.bf16.mxu0 0
          %729 = vmatpush1.bf16.xpose.msra.mxu0 0
          %730 = vmatprep.subr.bf16.mxu0 0
          %731 = vmatpush1.bf16.xpose.msra.mxu0 0
          %732 = vmatprep.subr.bf16.mxu0 0
          %733 = vmatpush1.bf16.xpose.msra.mxu0 0
          %734 = vmatprep.subr.bf16.mxu0 0
          %735 = vmatpush1.bf16.xpose.msra.mxu0 0
          %736 = vmatprep.subr.bf16.mxu0 0
          %737 = vmatpush1.bf16.xpose.msra.mxu0 0
          %738 = vmatprep.mubr.bf16.mxu0 %v645
          %739 = vmatmul.mubr.bf16.gmra.mrb[0].mxu0 %v644
          %v740 = vpop.f32.mrb[0].mxu0
          %v741 = vadd.f32 %v701, %v740
          %v742 = vpop.f32.mrb[0].mxu0
          %v743 = vpop.f32.mrb[0].mxu0
          %v744 = vpop.f32.mrb[0].mxu0
          %745 = vdwg.mxu0
          %v746 = vadd.f32 %v619, %v741
          %vm747 = vcmask 123904
          %748 = vst.msk [vmem:[#allocation3] sm:$0x3] %vm747, %v746
          %v749 = vld [vmem:[#allocation11] sm:$0x1]
          %v750 = vmul.f32 %v618, %v618
          %v752 = vcombine.high %v750, %v750
          %v754 = vunpack.c.l.s4 1983009808
          %v755 = vunpack.c.0.s8 %v754
          %v756 = vlaneseq
          %v757 = vshrl.u32 %v756, 7
          %v758 = vsub.s32 %v755, %v757
          %v759 = vrot.slane %v750, %v758
          %v761 = vunpack.c.l.s4 1983009808
          %v762 = vunpack.c.0.s8 %v761
          %v763 = vlaneseq
          %v764 = vshrl.u32 %v763, 7
          %v765 = vsub.s32 %v762, %v764
          %v766 = vrot.slane %v752, %v765
          %v767 = vcombine.high %v759, %v759
          %v768 = vcombine.high %v766, %v766
          %vm773 = vcmask 1041408
          %v774 = vsel %vm773, %v759, 0.0
          %v775 = vsel %vm773, %v767, 0.0
          %v776 = vadd.f32 %v774, %v775
          %v777 = vsel %vm773, %v766, 0.0
          %v778 = vadd.f32 %v776, %v777
          %v779 = vsel %vm773, %v768, 0.0
          %v780 = vadd.f32 %v778, %v779
          %781 = vadd.xlane.f32.xlu0 %v780
          %v782 = vpop.xlane.xlu0 %781
          %v783 = vrot.slane %v782, 4
          %v784 = vadd.f32 %v782, %v783
          %v785 = vrot.slane %v784, 2
          %v786 = vadd.f32 %v784, %v785
          %v787 = vrot.slane %v786, 1
          %v788 = vadd.f32 %v786, %v787
          %s789 = vtos %v788
          %v790 = vstv %s789
          %v791 = vadd.f32 %v749, %v790
          %vm792 = vcmask 0
          %793 = vst.msk [vmem:[#allocation11] sm:$0x1] %vm792, %v791
        $region76: #{tpu_custom_call.1} parent=35 // pred_fallthru
          _
        %p794 = pnand %p313, %p297
        %p795 = pneg %p794
        %p796 = scmp.lt.s32.totalorder %s26, 3
        %p797 = pnand %p795, %p796
        %p798 = pneg %p797
        // Predicated region
        $region77: #{tpu_custom_call.1} parent=35 // pred_check
          _
        $region78: #{tpu_custom_call.1} parent=35 // pred_check_branch
          %800 = sbr.rel (%p797) target = $region80
        $region79: #{tpu_custom_call.1} parent=35 // pred_region
          %v801 = vld [vmem:[#allocation2] sm:$0x3]
          %v802 = vld [vmem:[#allocation3] sm:$0x3]
          %v803 = vadd.f32 %v801, %v802
          %vm804 = vcmask 123904
          %v805 = vsel %vm804, %v803, -inf
          %806 = vmax.xlane.f32.xlu0 %v805
          %v807 = vpop.xlane.xlu0 %806
          %v808 = vsub.f32 %v803, %v807
          %v809 = vmul.f32 %v808, 1.442695
          %v810 = vpow.pop %v809
          %v811 = vsel %vm804, %v810, 0.0
          %812 = vadd.xlane.f32.xlu0 %v811
          %v813 = vpop.xlane.xlu0 %812
          %v814 = vrcp.pop %v813
          %v815 = vmul.f32 %v810, %v814
          %v816 = vld [vmem:[#allocation5] sm:$0x3]
          %v817 = vsub.f32 %v815, %v816
          %v818 = vmul.f32 %v817, 0.15
          %819 = vst.msk [vmem:[#allocation6] sm:$0x3] %vm804, %v818
        $region80: #{tpu_custom_call.1} parent=35 // pred_fallthru
          _
        %p820 = scmp.eq.s32.totalorder %s26, 3
        %p821 = pnand %p795, %p820
        %p822 = pneg %p821
        // Predicated region
        $region81: #{tpu_custom_call.1} parent=35 // pred_check
          _
        $region82: #{tpu_custom_call.1} parent=35 // pred_check_branch
          %824 = sbr.rel (%p821) target = $region84
        $region83: #{tpu_custom_call.1} parent=35 // pred_region
          %v825 = vld [vmem:[#allocation2] sm:$0x3]
          %v826 = vld [vmem:[#allocation3] sm:$0x3]
          %v827 = vadd.f32 %v825, %v826
          %vm828 = vcmask 123904
          %v829 = vsel %vm828, %v827, -inf
          %830 = vmax.xlane.f32.xlu0 %v829
          %v831 = vpop.xlane.xlu0 %830
          %v832 = vsub.f32 %v827, %v831
          %v833 = vmul.f32 %v832, 1.442695
          %v834 = vpow.pop %v833
          %v835 = vsel %vm828, %v834, 0.0
          %836 = vadd.xlane.f32.xlu0 %v835
          %v837 = vpop.xlane.xlu0 %836
          %v838 = vlog2.pop %v837
          %v839 = vmul.f32 %v838, 0.6931472
          %v840 = vsub.f32 %v832, %v839
          %v841 = vld [vmem:[#allocation5] sm:$0x3]
          %v842 = vld [vmem:[#allocation4] sm:$0x3]
          %v843 = vsub.f32 %v842, %v840
          %v844 = vmul.f32 %v841, %v843
          %v845 = vsel %vm828, %v844, 0.0
          %846 = vadd.xlane.f32.xlu0 %v845
          %v847 = vpop.xlane.xlu0 %846
          %v848 = vrot.slane %v847, 4
          %v849 = vadd.f32 %v847, %v848
          %v850 = vrot.slane %v849, 2
          %v851 = vadd.f32 %v849, %v850
          %v852 = vrot.slane %v851, 1
          %v853 = vadd.f32 %v851, %v852
          %s854 = vtos %v853
          %v855 = vstv %s854
          %v856 = vmul.f32 %v855, 0.5
          %vm857 = vcmask 0
          %858 = vst.msk [vmem:[#allocation18] sm:$0x1] %vm857, %v856
        $region84: #{tpu_custom_call.1} parent=35 // pred_fallthru
          _
        %p859 = pnand %p317, %p319
        %p860 = pneg %p859
        // Predicated region
        $region85: #{tpu_custom_call.1} parent=35 // pred_check
          _
        $region86: #{tpu_custom_call.1} parent=35 // pred_check_branch
          %862 = sbr.rel (%p859) target = $region88
        $region87: #{tpu_custom_call.1} parent=35 // pred_region
          %vm863 = vcmask 1024
          %864 = vst.msk [vmem:[#allocation10] sm:$0x3] %vm863, 0.0
        $region88: #{tpu_custom_call.1} parent=35 // pred_fallthru
          _
        // Predicated region
        $region89: #{tpu_custom_call.1} parent=35 // pred_check
          _
        $region90: #{tpu_custom_call.1} parent=35 // pred_check_branch
          %866 = sbr.rel (%p316) target = $region92
        $region91: #{tpu_custom_call.1} parent=35 // pred_region
          %v867 = vld [vmem:[#allocation11] sm:$0x1]
          %v868 = vrsqrt.pop %v867
          %v869 = vmul.f32 %v867, %v868
          %vm870 = vcmp.eq.f32.partialorder %v867, inf
          %v871 = vsel %vm870, %v867, %v869
          %vm872 = vcmp.eq.f32.partialorder %v867, 0.0
          %v873 = vand.u32 %v867, 2147483648
          %v874 = vsel %vm872, %v873, %v871
          %v875 = vadd.f32 %v874, 1e-12
          %v876 = vrcp.pop %v875
          %v877 = vld [vmem:[#allocation6] sm:$0x3]
          %v878 = vpack.c.bf16 %v877, %v877
          %v883 = vunpack.c.l.b16 %v293
          %v884 = vunpack.c.h.b16 %v293
          %v885 = vunpack.c.l.b16 %v294
          %v886 = vunpack.c.h.b16 %v294
          %v887 = vunpack.c.l.b16 %v295
          %v888 = vunpack.c.h.b16 %v295
          %v889 = vunpack.c.l.b16 %v296
          %v890 = vunpack.c.h.b16 %v296
          %v891 = vpack.c.b16 %v887, %v883
          %v892 = vpack.c.b16 %v888, %v884
          %v893 = vpack.c.b16 %v889, %v885
          %v894 = vpack.c.b16 %v890, %v886
          %vm899 = vcmask 130048
          %v901 = vsel %vm899, %v878, 0
          %903 = vmatprep.subr.bf16.mxu0 %v892
          %904 = vmatpush1.bf16.msra.mxu0 %v891
          %905 = vmatprep.subr.bf16.mxu0 0
          %906 = vmatpush1.bf16.msra.mxu0 0
          %907 = vmatprep.subr.bf16.mxu0 0
          %908 = vmatpush1.bf16.msra.mxu0 0
          %909 = vmatprep.subr.bf16.mxu0 0
          %910 = vmatpush1.bf16.msra.mxu0 0
          %911 = vmatprep.subr.bf16.mxu0 0
          %912 = vmatpush1.bf16.msra.mxu0 0
          %913 = vmatprep.subr.bf16.mxu0 0
          %914 = vmatpush1.bf16.msra.mxu0 0
          %915 = vmatprep.subr.bf16.mxu0 0
          %916 = vmatpush1.bf16.msra.mxu0 0
          %917 = vmatprep.subr.bf16.mxu0 0
          %918 = vmatpush1.bf16.msra.mxu0 0
          %919 = vmatprep.subr.bf16.mxu0 0
          %920 = vmatpush1.bf16.msra.mxu0 0
          %921 = vmatprep.subr.bf16.mxu0 0
          %922 = vmatpush1.bf16.msra.mxu0 0
          %923 = vmatprep.subr.bf16.mxu0 0
          %924 = vmatpush1.bf16.msra.mxu0 0
          %925 = vmatprep.subr.bf16.mxu0 0
          %926 = vmatpush1.bf16.msra.mxu0 0
          %927 = vmatprep.subr.bf16.mxu0 0
          %928 = vmatpush1.bf16.msra.mxu0 0
          %929 = vmatprep.subr.bf16.mxu0 0
          %930 = vmatpush1.bf16.msra.mxu0 0
          %931 = vmatprep.subr.bf16.mxu0 0
          %932 = vmatpush1.bf16.msra.mxu0 0
          %933 = vmatprep.subr.bf16.mxu0 0
          %934 = vmatpush1.bf16.msra.mxu0 0
          %935 = vmatprep.mubr.bf16.mxu0 0
          %936 = vmatmul.mubr.bf16.gmra.mrb[0].mxu0 %v901
          %v937 = vpop.f32.mrb[0].mxu0
          %v938 = vadd.f32 0.0, %v937
          %v939 = vpop.f32.mrb[0].mxu0
          %v940 = vadd.f32 0.0, %v939
          %v941 = vpop.f32.mrb[0].mxu0
          %v942 = vpop.f32.mrb[0].mxu0
          %943 = vdwg.mxu0
          %944 = vmatprep.subr.bf16.mxu0 %v894
          %945 = vmatpush1.bf16.msra.mxu0 %v893
          %946 = vmatprep.subr.bf16.mxu0 0
          %947 = vmatpush1.bf16.msra.mxu0 0
          %948 = vmatprep.subr.bf16.mxu0 0
          %949 = vmatpush1.bf16.msra.mxu0 0
          %950 = vmatprep.subr.bf16.mxu0 0
          %951 = vmatpush1.bf16.msra.mxu0 0
          %952 = vmatprep.subr.bf16.mxu0 0
          %953 = vmatpush1.bf16.msra.mxu0 0
          %954 = vmatprep.subr.bf16.mxu0 0
          %955 = vmatpush1.bf16.msra.mxu0 0
          %956 = vmatprep.subr.bf16.mxu0 0
          %957 = vmatpush1.bf16.msra.mxu0 0
          %958 = vmatprep.subr.bf16.mxu0 0
          %959 = vmatpush1.bf16.msra.mxu0 0
          %960 = vmatprep.subr.bf16.mxu0 0
          %961 = vmatpush1.bf16.msra.mxu0 0
          %962 = vmatprep.subr.bf16.mxu0 0
          %963 = vmatpush1.bf16.msra.mxu0 0
          %964 = vmatprep.subr.bf16.mxu0 0
          %965 = vmatpush1.bf16.msra.mxu0 0
          %966 = vmatprep.subr.bf16.mxu0 0
          %967 = vmatpush1.bf16.msra.mxu0 0
          %968 = vmatprep.subr.bf16.mxu0 0
          %969 = vmatpush1.bf16.msra.mxu0 0
          %970 = vmatprep.subr.bf16.mxu0 0
          %971 = vmatpush1.bf16.msra.mxu0 0
          %972 = vmatprep.subr.bf16.mxu0 0
          %973 = vmatpush1.bf16.msra.mxu0 0
          %974 = vmatprep.subr.bf16.mxu0 0
          %975 = vmatpush1.bf16.msra.mxu0 0
          %976 = vmatprep.mubr.bf16.mxu0 0
          %977 = vmatmul.mubr.bf16.gmra.mrb[0].mxu0 %v901
          %v978 = vpop.f32.mrb[0].mxu0
          %v979 = vadd.f32 0.0, %v978
          %v980 = vpop.f32.mrb[0].mxu0
          %v981 = vadd.f32 0.0, %v980
          %v982 = vpop.f32.mrb[0].mxu0
          %v983 = vpop.f32.mrb[0].mxu0
          %984 = vdwg.mxu0
          %s985 = smul.u32 %s27, 4
          %s986 = smul.addr %s985, 2
          %s987 = scalar_lea.vmem [#allocation7], %s986
          %v988 = vld [vmem:[%s987] sm:$0xff]
          %v990 = vlaneseq
          %v991 = vshrl.u32 %v990, 7
          %v992 = vsub.s32 0, %v991
          %v993 = vrot.slane %v876, %v992
          %994 = vset.pattern.permute.xlu0 0
          %995 = vperm.xlu0 %994, %v993
          %v996 = vpop.permute.xlu0 %995
          %v998 = vmul.f32 %v988, %v996
          %v1000 = vcombine.high %v998, %v998
          %v1002 = vunpack.c.l.s4 1983009808
          %v1003 = vunpack.c.0.s8 %v1002
          %v1004 = vlaneseq
          %v1005 = vshrl.u32 %v1004, 7
          %v1006 = vsub.s32 %v1003, %v1005
          %v1007 = vrot.slane %v998, %v1006
          %v1009 = vunpack.c.l.s4 1983009808
          %v1010 = vunpack.c.0.s8 %v1009
          %v1011 = vlaneseq
          %v1012 = vshrl.u32 %v1011, 7
          %v1013 = vsub.s32 %v1010, %v1012
          %v1014 = vrot.slane %v1000, %v1013
          %v1015 = vcombine.high %v1007, %v1007
          %v1016 = vcombine.high %v1014, %v1014
          %v1021 = vsub.f32 %v938, %v1007
          %v1022 = vsub.f32 %v940, %v1015
          %v1023 = vsub.f32 %v979, %v1014
          %v1024 = vsub.f32 %v981, %v1016
          %v1029 = vcombine.low %v1021, %v1022
          %v1030 = vcombine.low %v1023, %v1024
          %v1032 = vunpack.c.l.s4 1983009808
          %v1033 = vunpack.c.0.s8 %v1032
          %v1034 = vlaneseq
          %v1035 = vshrl.u32 %v1034, 7
          %v1036 = vsub.s32 %v1033, %v1035
          %v1037 = vrot.slane %v1029, %v1036
          %v1039 = vunpack.c.l.s4 1983009808
          %v1040 = vunpack.c.0.s8 %v1039
          %v1041 = vlaneseq
          %v1042 = vshrl.u32 %v1041, 7
          %v1043 = vsub.s32 %v1040, %v1042
          %v1044 = vrot.slane %v1030, %v1043
          %v1045 = vcombine.low %v1037, %v1044
          %s1047 = smul.addr %s985, 2
          %s1048 = scalar_lea.vmem [#allocation8], %s1047
          %1049 = vst [vmem:[%s1048] sm:$0xff] %v1045
          %v1050 = vld [vmem:[#allocation10] sm:$0x3]
          %v1051 = vmul.f32 %v1021, %v1021
          %v1052 = vmul.f32 %v1022, %v1022
          %v1053 = vmul.f32 %v1023, %v1023
          %v1054 = vmul.f32 %v1024, %v1024
          %vm1055 = vcmask 1041408
          %v1056 = vsel %vm1055, %v1051, 0.0
          %v1057 = vsel %vm1055, %v1052, 0.0
          %v1058 = vadd.f32 %v1056, %v1057
          %v1059 = vsel %vm1055, %v1053, 0.0
          %v1060 = vadd.f32 %v1058, %v1059
          %v1061 = vsel %vm1055, %v1054, 0.0
          %v1062 = vadd.f32 %v1060, %v1061
          %1063 = vadd.xlane.f32.xlu0 %v1062
          %v1064 = vpop.xlane.xlu0 %1063
          %v1065 = vadd.f32 %v1050, %v1064
          %vm1066 = vcmask 1024
          %1067 = vst.msk [vmem:[#allocation10] sm:$0x3] %vm1066, %v1065
        $region92: #{tpu_custom_call.1} parent=35 // pred_fallthru
          _
        // Predicated region
        $region93: #{tpu_custom_call.1} parent=35 // pred_check
          %p1068 = pneg %p146
        $region94: #{tpu_custom_call.1} parent=35 // pred_check_branch
          %1070 = sbr.rel (%p1068) target = $region96
        $region95: #{tpu_custom_call.1} parent=35 // pred_region
          %s1072 = ssub.s32 16, 16
          %1073 = vsyncadd [#allocation14], %s1072
          %s1075 = sshll.u32 [#allocation18], 4
          %s1076 = int_to_ptr.vmem [resolvable:$true] %s1075
          %1078 = dma.vmem_to_hbm [thread:$0]  %s1076, 16, %s4, [#allocation14]
        $region96: #{tpu_custom_call.1} parent=35 // pred_fallthru
          _
        // Predicated region
        $region97: #{tpu_custom_call.1} parent=35 // pred_check
          %p1079 = pneg %p146
        $region98: #{tpu_custom_call.1} parent=35 // pred_check_branch
          %1081 = sbr.rel (%p1079) target = $region100
        $region99: #{tpu_custom_call.1} parent=35 // pred_region
          %1082 = dma.done [#allocation14], 16
        $region100: #{tpu_custom_call.1} parent=35 // pred_fallthru
          _
      $region36: #{tpu_custom_call.1} parent=5 // pred_fallthru
        _
      %p1083 = scmp.le.s32.totalorder 2, %s17
      // Predicated region
      $region101: #{tpu_custom_call.1} parent=5 // pred_check
        %p1084 = pneg %p1083
      $region102: #{tpu_custom_call.1} parent=5 // pred_check_branch
        %1086 = sbr.rel (%p1084) target = $region104
      $region103: #{tpu_custom_call.1} parent=5 // pred_region
        %s1087 = ssub.s32 %s17, 2
      $region104: #{tpu_custom_call.1} parent=5 // pred_fallthru
        _
    $region6: #{tpu_custom_call.1} parent=1 // loop_footer
      %s21 = sadd.s32 1, %s17
    $region7: #{tpu_custom_call.1} parent=1 // loop_footer_branch
      %16 = sbr.rel target = $region3
    $region8: #{tpu_custom_call.1} parent=1 // loop_exit
      _
    %1088 = vsyncpa [#allocation13], 1
    %s1089 = scalar_lea.sflag [#allocation13], 1
    %1090 = vsyncpa %s1089, 1
    %1091 = vsyncpa [#allocation16], 1
    %s1092 = scalar_lea.sflag [#allocation16], 1
    %1093 = vsyncpa %s1092, 1
    %1094 = vsyncpa [#allocation14], 1
    %s1095 = scalar_lea.sflag [#allocation14], 1
    %1096 = vsyncpa %s1095, 1

</llo_original>
